<compile_context>
chip_gen: v7x
topology: tpu7x:2x2x1
jax: 0.10.0
libtpu: 0.0.40
codegen_flags: <defaults>
</compile_context>

<pallas_src>
import functools

import jax
import jax.numpy as jnp
from jax.experimental import pallas as pl
from jax.experimental.pallas import tpu as pltpu

# ---------------- config (small shapes consistent with the module) ----------------
N_GRID = 16          # grid nodes
N_MESH = 8           # mesh nodes
FG     = 10          # input_dim_grid_nodes
FM     = 3           # input_dim_mesh_nodes
T      = 3           # time / sequence length (only last step is used: net(...)[-1])
H      = 32          # hidden_dim (reduced from 512 for a small synthetic run)
L      = 2           # processor_layers (reduced from 4)
DOUT   = 1           # output_dim_grid_nodes
LIN    = 32          # lin_channels
END    = 32          # end_channels
OUT    = 4           # out_channels (softmax over this dim: classification)

LANES  = 128         # lane-dense slab / activation width


# ------------------------------ slab packer ----------------------------------------
class _SlabPacker:
    """Packs many small 2-D f32 arrays into one [rows, LANES] slab.

    Row offsets are aligned to 8 (sublane) so static in-kernel slices load from
    aligned bases; columns are zero-padded to LANES and the true (rows, cols)
    of every entry is recorded for exact slicing inside the kernel.
    """

    def __init__(self, cols=LANES):
        self.cols = cols
        self._chunks = []
        self.index = {}        # name -> (row_offset, true_rows, true_cols)
        self._off = 0

    def add(self, name, arr):
        arr = jnp.asarray(arr, jnp.float32)
        r, c = arr.shape
        assert c <= self.cols, (name, arr.shape)
        padded = jnp.pad(arr, ((0, (-r) % 8), (0, self.cols - c)))
        self._chunks.append(padded)
        self.index[name] = (self._off, r, c)
        self._off += padded.shape[0]

    def finish(self):
        return jnp.concatenate(self._chunks, axis=0)


# ---------------------------------- kernel ----------------------------------------
def graphcast_kernel(x_ref, slab_ref, out_ref, *, idx, num_proc_layers):
    def getp(name):
        off, r, c = idx[name]
        return slab_ref[pl.ds(off, r), pl.ds(0, c)]

    def mm(a, b):
        return jnp.dot(a, b, preferred_element_type=jnp.float32)

    def ln(x, g, b):
        # Lane-padded LayerNorm: x's lanes >= H are exactly zero, so moments
        # computed as E[x], E[x^2] over the true width H are exact.  The
        # zero-padded gamma/beta re-zero the padded lanes afterwards.
        inv_h = 1.0 / float(H)
        mu = jnp.sum(x, axis=-1, keepdims=True) * inv_h
        ex2 = jnp.sum(x * x, axis=-1, keepdims=True) * inv_h
        var = ex2 - mu * mu
        return (x - mu) * jax.lax.rsqrt(var + 1e-5) * g + b

    x2d = x_ref[...]            # [N_GRID, FG*T] (all timesteps, flattened)
    mf = getp("mesh_nfeat")     # [N_MESH, FM]

    # --- encoders: first Linear + ReLU. The grid-encoder weight is stored in
    #     time-expanded form (rows for t != T-1 are zero), so this matmul is
    #     exactly "last timestep @ ge_w1": net(X.permute(2,0,1))[-1]. ----------
    g_h1 = jnp.maximum(mm(x2d, getp("ge_w1t")) + getp("ge_b1"), 0.0)
    m_h1 = jnp.maximum(mm(mf, getp("me_w1")) + getp("me_b1"), 0.0)

    # --- second Linear per type, then ONE batched LayerNorm over all nodes -----
    g_h2 = mm(g_h1, getp("ge_w2")) + getp("ge_b2")
    m_h2 = mm(m_h1, getp("me_w2")) + getp("me_b2")
    enc = jnp.concatenate([g_h2, m_h2], axis=0)                 # [N_GRID+N_MESH, 128]
    enc = ln(enc, getp("enc_g"), getp("enc_b"))                 # per-row gamma/beta
    g_enc = enc[:N_GRID]
    m_h = enc[N_GRID:]

    # --- grid2mesh: sum-aggregate encoded grid features onto mesh nodes --------
    m_h = m_h + mm(getp("a_g2m"), g_enc)

    # --- mesh processor layers: aggregate -> MLP -> residual -> LayerNorm ------
    a_mesh = getp("a_mesh")
    for l in range(num_proc_layers):  # static unroll (L is small)
        agg = mm(a_mesh, m_h)                                   # sum aggregation
        upd = jnp.maximum(mm(agg, getp(f"p_w1_{l}")) + getp(f"p_b1_{l}"), 0.0)
        upd = mm(upd, getp(f"p_w2_{l}")) + getp(f"p_b2_{l}")
        m_h = ln(m_h + upd, getp(f"p_g_{l}"), getp(f"p_bt_{l}"))

    # --- mesh2grid: scatter processed mesh features back to grid ---------------
    g_h = g_enc + mm(getp("a_m2g"), m_h)

    # --- decoder Linear+ReLU, then fused (decoder-2nd o head-linear1) + ReLU ---
    d1 = jnp.maximum(mm(g_h, getp("d_w1")) + getp("d_b1"), 0.0)
    h = jnp.maximum(mm(d1, getp("fused_w")) + getp("fused_b"), 0.0)
    h = jnp.maximum(mm(h, getp("h2_w")) + getp("h2_b"), 0.0)
    logits = mm(h, getp("ho_w")) + getp("ho_b")                 # [N_GRID, 128], lanes>=OUT are 0

    # --- Softmax(dim=-1) over the true OUT classes (task_type='classification')
    lg = logits[:, :OUT]
    z = lg - jnp.max(lg, axis=-1, keepdims=True)
    e = jnp.exp(z)
    s = jnp.sum(e, axis=-1, keepdims=True)
    # exact reciprocal keeps the 1e-5 row-sum check; approx=True would move the
    # divide to the EUP but relaxes accuracy.
    out_ref[...] = e * pl.reciprocal(s, approx=False)


# --------------------------------- wrapper ----------------------------------------
def graphcast_forward(X, slab, *, idx):
    """X: [N_grid, F_grid, T] (PyTorch layout); returns [N_grid, OUT] softmax probs."""
    n = X.shape[0]
    # Free, layout-preserving metadata reshape (row-major); the last-timestep
    # selection is folded into the time-expanded encoder weight in the slab,
    # so no sliced activation round-trips through HBM before the kernel.
    x2d = X.reshape(n, FG * T)
    out_shape = jax.ShapeDtypeStruct((n, OUT), jnp.float32)

    return pl.pallas_call(
        functools.partial(graphcast_kernel, idx=idx, num_proc_layers=L),
        grid=(1,),
        in_specs=[pl.BlockSpec(x2d.shape, lambda i: (0, 0)),
                  pl.BlockSpec(slab.shape, lambda i: (0, 0))],
        out_specs=pl.BlockSpec(out_shape.shape, lambda i: (0, 0)),
        out_shape=out_shape,
        compiler_params=pltpu.CompilerParams(
            dimension_semantics=("arbitrary",)),
    )(x2d, slab)


# -------------------- parameter + graph packing (done once) ------------------------
def build_slab(key, mesh_nfeat, a_g2m, a_mesh, a_m2g):
    """Builds all module parameters and packs them -- together with the graph
    structure (adjacency matrices) and the static mesh-node features -- into a
    single lane-dense [rows, 128] slab (one kernel operand)."""
    keys = iter(jax.random.split(key, 64))

    def lin(din, dout):
        w = jax.random.normal(next(keys), (din, dout), jnp.float32) / jnp.sqrt(
            jnp.float32(din))
        b = 0.01 * jax.random.normal(next(keys), (1, dout), jnp.float32)
        return w, b

    def padw(w):
        # Zero-pad both K rows and N cols to 128: the matching activation lanes
        # are zero, so the matmul result is exact and every load is unmasked.
        return jnp.pad(w, ((0, LANES - w.shape[0]), (0, LANES - w.shape[1])))

    def padr(a):
        # Lane-pad only (rows keep their true K / node extent).
        return jnp.pad(a, ((0, 0), (0, LANES - a.shape[1])))

    ones = lambda d: jnp.ones((1, d), jnp.float32)
    zeros = lambda d: jnp.zeros((1, d), jnp.float32)

    pk = _SlabPacker(LANES)

    # grid encoder (first weight stored time-expanded: rows j*T+t, zero unless
    # t == T-1, so x2d @ ge_w1t == X[:, :, -1] @ ge_w1 exactly)
    ge_w1, ge_b1 = lin(FG, H)
    ge_w1t = jnp.zeros((FG * T, H), jnp.float32).at[T - 1::T, :].set(ge_w1)
    ge_w2, ge_b2 = lin(H, H)
    ge_g, ge_bt = ones(H), zeros(H)
    # mesh encoder
    me_w1, me_b1 = lin(FM, H)
    me_w2, me_b2 = lin(H, H)
    me_g, me_bt = ones(H), zeros(H)

    pk.add("ge_w1t", padr(ge_w1t)); pk.add("ge_b1", padr(ge_b1))
    pk.add("ge_w2", padw(ge_w2));   pk.add("ge_b2", padr(ge_b2))
    pk.add("me_w1", padr(me_w1));   pk.add("me_b1", padr(me_b1))
    pk.add("me_w2", padw(me_w2));   pk.add("me_b2", padr(me_b2))
    # per-row gamma/beta for the batched (grid ++ mesh) encoder LayerNorm
    pk.add("enc_g", padr(jnp.concatenate(
        [jnp.broadcast_to(ge_g, (N_GRID, H)),
         jnp.broadcast_to(me_g, (N_MESH, H))], axis=0)))
    pk.add("enc_b", padr(jnp.concatenate(
        [jnp.broadcast_to(ge_bt, (N_GRID, H)),
         jnp.broadcast_to(me_bt, (N_MESH, H))], axis=0)))

    # processor layers
    for l in range(L):
        w1, b1 = lin(H, H)
        w2, b2 = lin(H, H)
        pk.add(f"p_w1_{l}", padw(w1)); pk.add(f"p_b1_{l}", padr(b1))
        pk.add(f"p_w2_{l}", padw(w2)); pk.add(f"p_b2_{l}", padr(b2))
        pk.add(f"p_g_{l}", padr(ones(H))); pk.add(f"p_bt_{l}", padr(zeros(H)))

    # grid decoder -> output_dim_grid_nodes, then head: linear1/linear2/output
    d_w1, d_b1 = lin(H, H)
    d_w2, d_b2 = lin(H, DOUT)
    h1_w, h1_b = lin(DOUT, LIN)
    h2_w, h2_b = lin(LIN, END)
    ho_w, ho_b = lin(END, OUT)

    # Exact algebraic fusion of decoder second linear (H->DOUT) with head
    # linear1 (DOUT->LIN): no nonlinearity between them in this formulation.
    fused_w = d_w2 @ h1_w                     # [H, LIN]
    fused_b = d_b2 @ h1_w + h1_b              # [1, LIN]

    pk.add("d_w1", padw(d_w1));       pk.add("d_b1", padr(d_b1))
    pk.add("fused_w", padw(fused_w)); pk.add("fused_b", padr(fused_b))
    pk.add("h2_w", padw(h2_w));       pk.add("h2_b", padr(h2_b))
    pk.add("ho_w", padw(ho_w));       pk.add("ho_b", padr(ho_b))

    # graph structure + static mesh node features (true widths; tiny)
    pk.add("a_g2m", a_g2m)            # [N_MESH, N_GRID]
    pk.add("a_mesh", a_mesh)          # [N_MESH, N_MESH]
    pk.add("a_m2g", a_m2g)            # [N_GRID, N_MESH]
    pk.add("mesh_nfeat", mesh_nfeat)  # [N_MESH, FM]

    return pk.finish(), pk.index


# ----------------------------------- main -------------------------------------------
if __name__ == "__main__":
    key = jax.random.PRNGKey(0)
    k1, k2, k3, k4, k5, kp = jax.random.split(key, 6)

    X = jax.random.normal(k1, (N_GRID, FG, T), jnp.float32)          # [node, feat, time]
    mesh_nfeat = jax.random.normal(k2, (N_MESH, FM), jnp.float32)
    a_mesh = (jax.random.uniform(k3, (N_MESH, N_MESH)) < 0.4).astype(jnp.float32)
    a_g2m = (jax.random.uniform(k4, (N_MESH, N_GRID)) < 0.3).astype(jnp.float32)
    a_m2g = (jax.random.uniform(k5, (N_GRID, N_MESH)) < 0.3).astype(jnp.float32)

    slab, idx = build_slab(kp, mesh_nfeat, a_g2m, a_mesh, a_m2g)

    out = graphcast_forward(X, slab, idx=idx)
    out = jax.block_until_ready(out)

    assert out.shape == (N_GRID, OUT)
    assert bool(jnp.all(jnp.isfinite(out)))
    # softmax rows must sum to 1
    assert bool(jnp.allclose(jnp.sum(out, axis=-1), 1.0, atol=1e-5))
    print("KERNEL_OK")
</pallas_src>

<mosaic_0001>
module attributes {stable_mosaic.version = 11 : i64} {
  func.func @graphcast_kernel(%arg0: i32, %arg1: memref<16x30xf32, #tpu.memory_space<vmem>>, %arg2: memref<1536x128xf32, #tpu.memory_space<vmem>>, %arg3: memref<16x4xf32, #tpu.memory_space<vmem>>) attributes {dimension_semantics = [#tpu.dimension_semantics<arbitrary>], iteration_bounds = array<i64: 1>, scalar_prefetch = 0 : i64, scratch_operands = 0 : i64, tpu.core_type = #tpu.core_type<tc>, window_params = [{pipeline_mode = #tpu.pipeline_mode<synchronous>, transform_indices = @transform_0, window_bounds = array<i64: 16, 30>}, {pipeline_mode = #tpu.pipeline_mode<synchronous>, transform_indices = @transform_1, window_bounds = array<i64: 1536, 128>}, {pipeline_mode = #tpu.pipeline_mode<synchronous>, transform_indices = @transform_2, window_bounds = array<i64: 16, 4>}]} {
    %c0 = arith.constant 0 : index
    %c0_0 = arith.constant 0 : index
    %0 = vector.load %arg1[%c0, %c0_0] : memref<16x30xf32, #tpu.memory_space<vmem>>, vector<16x30xf32>
    %c1528 = arith.constant 1528 : index
    %c0_1 = arith.constant 0 : index
    %1 = vector.load %arg2[%c1528, %c0_1] : memref<1536x128xf32, #tpu.memory_space<vmem>>, vector<8x3xf32>
    %c0_2 = arith.constant 0 : index
    %c0_3 = arith.constant 0 : index
    %2 = vector.load %arg2[%c0_2, %c0_3] : memref<1536x128xf32, #tpu.memory_space<vmem>>, vector<30x128xf32>
    %cst = arith.constant dense<0.000000e+00> : vector<16x128xf32>
    %3 = tpu.matmul %0, %2, %cst {dimension_numbers = #tpu.dot_dimension_numbers<[1], [0], [0], [1], [0, 0, 1, 1], [], []>} : vector<16x30xf32>, vector<30x128xf32>, vector<16x128xf32> -> vector<16x128xf32>
    %c32 = arith.constant 32 : index
    %c0_4 = arith.constant 0 : index
    %4 = vector.load %arg2[%c32, %c0_4] : memref<1536x128xf32, #tpu.memory_space<vmem>>, vector<1x128xf32>
    %5 = vector.broadcast %4 : vector<1x128xf32> to vector<16x128xf32>
    %6 = arith.addf %3, %5 : vector<16x128xf32>
    %cst_5 = arith.constant 0.000000e+00 : f32
    %7 = vector.broadcast %cst_5 : f32 to vector<16x128xf32>
    %8 = arith.maximumf %6, %7 : vector<16x128xf32>
    %c176 = arith.constant 176 : index
    %c0_6 = arith.constant 0 : index
    %9 = vector.load %arg2[%c176, %c0_6] : memref<1536x128xf32, #tpu.memory_space<vmem>>, vector<3x128xf32>
    %cst_7 = arith.constant dense<0.000000e+00> : vector<8x128xf32>
    %10 = tpu.matmul %1, %9, %cst_7 {dimension_numbers = #tpu.dot_dimension_numbers<[1], [0], [0], [1], [0, 0, 1, 1], [], []>} : vector<8x3xf32>, vector<3x128xf32>, vector<8x128xf32> -> vector<8x128xf32>
    %c184 = arith.constant 184 : index
    %c0_8 = arith.constant 0 : index
    %11 = vector.load %arg2[%c184, %c0_8] : memref<1536x128xf32, #tpu.memory_space<vmem>>, vector<1x128xf32>
    %12 = vector.broadcast %11 : vector<1x128xf32> to vector<8x128xf32>
    %13 = arith.addf %10, %12 : vector<8x128xf32>
    %cst_9 = arith.constant 0.000000e+00 : f32
    %14 = vector.broadcast %cst_9 : f32 to vector<8x128xf32>
    %15 = arith.maximumf %13, %14 : vector<8x128xf32>
    %c40 = arith.constant 40 : index
    %c0_10 = arith.constant 0 : index
    %16 = vector.load %arg2[%c40, %c0_10] : memref<1536x128xf32, #tpu.memory_space<vmem>>, vector<128x128xf32>
    %cst_11 = arith.constant dense<0.000000e+00> : vector<16x128xf32>
    %17 = tpu.matmul %8, %16, %cst_11 {dimension_numbers = #tpu.dot_dimension_numbers<[1], [0], [0], [1], [0, 0, 1, 1], [], []>} : vector<16x128xf32>, vector<128x128xf32>, vector<16x128xf32> -> vector<16x128xf32>
    %c168 = arith.constant 168 : index
    %c0_12 = arith.constant 0 : index
    %18 = vector.load %arg2[%c168, %c0_12] : memref<1536x128xf32, #tpu.memory_space<vmem>>, vector<1x128xf32>
    %19 = vector.broadcast %18 : vector<1x128xf32> to vector<16x128xf32>
    %20 = arith.addf %17, %19 : vector<16x128xf32>
    %c192 = arith.constant 192 : index
    %c0_13 = arith.constant 0 : index
    %21 = vector.load %arg2[%c192, %c0_13] : memref<1536x128xf32, #tpu.memory_space<vmem>>, vector<128x128xf32>
    %cst_14 = arith.constant dense<0.000000e+00> : vector<8x128xf32>
    %22 = tpu.matmul %15, %21, %cst_14 {dimension_numbers = #tpu.dot_dimension_numbers<[1], [0], [0], [1], [0, 0, 1, 1], [], []>} : vector<8x128xf32>, vector<128x128xf32>, vector<8x128xf32> -> vector<8x128xf32>
    %c320 = arith.constant 320 : index
    %c0_15 = arith.constant 0 : index
    %23 = vector.load %arg2[%c320, %c0_15] : memref<1536x128xf32, #tpu.memory_space<vmem>>, vector<1x128xf32>
    %24 = vector.broadcast %23 : vector<1x128xf32> to vector<8x128xf32>
    %25 = arith.addf %22, %24 : vector<8x128xf32>
    %26 = tpu.concatenate %20, %25 in 0 : vector<16x128xf32>, vector<8x128xf32> -> vector<24x128xf32>
    %c328 = arith.constant 328 : index
    %c0_16 = arith.constant 0 : index
    %27 = vector.load %arg2[%c328, %c0_16] : memref<1536x128xf32, #tpu.memory_space<vmem>>, vector<24x128xf32>
    %c352 = arith.constant 352 : index
    %c0_17 = arith.constant 0 : index
    %28 = vector.load %arg2[%c352, %c0_17] : memref<1536x128xf32, #tpu.memory_space<vmem>>, vector<24x128xf32>
    %cst_18 = arith.constant dense<0.000000e+00> : vector<24xf32>
    %29 = vector.multi_reduction <add>, %26, %cst_18 [1] : vector<24x128xf32> to vector<24xf32>
    %30 = vector.shape_cast %29 : vector<24xf32> to vector<24x1xf32>
    %cst_19 = arith.constant 3.125000e-02 : f32
    %31 = vector.broadcast %cst_19 : f32 to vector<24x1xf32>
    %32 = arith.mulf %30, %31 : vector<24x1xf32>
    %33 = arith.mulf %26, %26 : vector<24x128xf32>
    %cst_20 = arith.constant dense<0.000000e+00> : vector<24xf32>
    %34 = vector.multi_reduction <add>, %33, %cst_20 [1] : vector<24x128xf32> to vector<24xf32>
    %35 = vector.shape_cast %34 : vector<24xf32> to vector<24x1xf32>
    %cst_21 = arith.constant 3.125000e-02 : f32
    %36 = vector.broadcast %cst_21 : f32 to vector<24x1xf32>
    %37 = arith.mulf %35, %36 : vector<24x1xf32>
    %38 = arith.mulf %32, %32 : vector<24x1xf32>
    %39 = arith.subf %37, %38 : vector<24x1xf32>
    %40 = vector.broadcast %32 : vector<24x1xf32> to vector<24x128xf32>
    %41 = arith.subf %26, %40 : vector<24x128xf32>
    %cst_22 = arith.constant 9.99999974E-6 : f32
    %42 = vector.broadcast %cst_22 : f32 to vector<24x1xf32>
    %43 = arith.addf %39, %42 : vector<24x1xf32>
    %44 = math.rsqrt %43 : vector<24x1xf32>
    %45 = vector.broadcast %44 : vector<24x1xf32> to vector<24x128xf32>
    %46 = arith.mulf %41, %45 : vector<24x128xf32>
    %47 = arith.mulf %46, %27 : vector<24x128xf32>
    %48 = arith.addf %47, %28 : vector<24x128xf32>
    %49 = vector.extract_strided_slice %48 {offsets = [0, 0], sizes = [16, 128], strides = [1, 1]} : vector<24x128xf32> to vector<16x128xf32>
    %50 = vector.extract_strided_slice %48 {offsets = [16, 0], sizes = [8, 128], strides = [1, 1]} : vector<24x128xf32> to vector<8x128xf32>
    %c1496 = arith.constant 1496 : index
    %c0_23 = arith.constant 0 : index
    %51 = vector.load %arg2[%c1496, %c0_23] : memref<1536x128xf32, #tpu.memory_space<vmem>>, vector<8x16xf32>
    %cst_24 = arith.constant dense<0.000000e+00> : vector<8x128xf32>
    %52 = tpu.matmul %51, %49, %cst_24 {dimension_numbers = #tpu.dot_dimension_numbers<[1], [0], [0], [1], [0, 0, 1, 1], [], []>} : vector<8x16xf32>, vector<16x128xf32>, vector<8x128xf32> -> vector<8x128xf32>
    %53 = arith.addf %50, %52 : vector<8x128xf32>
    %c1504 = arith.constant 1504 : index
    %c0_25 = arith.constant 0 : index
    %54 = vector.load %arg2[%c1504, %c0_25] : memref<1536x128xf32, #tpu.memory_space<vmem>>, vector<8x8xf32>
    %cst_26 = arith.constant dense<0.000000e+00> : vector<8x128xf32>
    %55 = tpu.matmul %54, %53, %cst_26 {dimension_numbers = #tpu.dot_dimension_numbers<[1], [0], [0], [1], [0, 0, 1, 1], [], []>} : vector<8x8xf32>, vector<8x128xf32>, vector<8x128xf32> -> vector<8x128xf32>
    %c376 = arith.constant 376 : index
    %c0_27 = arith.constant 0 : index
    %56 = vector.load %arg2[%c376, %c0_27] : memref<1536x128xf32, #tpu.memory_space<vmem>>, vector<128x128xf32>
    %cst_28 = arith.constant dense<0.000000e+00> : vector<8x128xf32>
    %57 = tpu.matmul %55, %56, %cst_28 {dimension_numbers = #tpu.dot_dimension_numbers<[1], [0], [0], [1], [0, 0, 1, 1], [], []>} : vector<8x128xf32>, vector<128x128xf32>, vector<8x128xf32> -> vector<8x128xf32>
    %c504 = arith.constant 504 : index
    %c0_29 = arith.constant 0 : index
    %58 = vector.load %arg2[%c504, %c0_29] : memref<1536x128xf32, #tpu.memory_space<vmem>>, vector<1x128xf32>
    %59 = vector.broadcast %58 : vector<1x128xf32> to vector<8x128xf32>
    %60 = arith.addf %57, %59 : vector<8x128xf32>
    %cst_30 = arith.constant 0.000000e+00 : f32
    %61 = vector.broadcast %cst_30 : f32 to vector<8x128xf32>
    %62 = arith.maximumf %60, %61 : vector<8x128xf32>
    %c512 = arith.constant 512 : index
    %c0_31 = arith.constant 0 : index
    %63 = vector.load %arg2[%c512, %c0_31] : memref<1536x128xf32, #tpu.memory_space<vmem>>, vector<128x128xf32>
    %cst_32 = arith.constant dense<0.000000e+00> : vector<8x128xf32>
    %64 = tpu.matmul %62, %63, %cst_32 {dimension_numbers = #tpu.dot_dimension_numbers<[1], [0], [0], [1], [0, 0, 1, 1], [], []>} : vector<8x128xf32>, vector<128x128xf32>, vector<8x128xf32> -> vector<8x128xf32>
    %c640 = arith.constant 640 : index
    %c0_33 = arith.constant 0 : index
    %65 = vector.load %arg2[%c640, %c0_33] : memref<1536x128xf32, #tpu.memory_space<vmem>>, vector<1x128xf32>
    %66 = vector.broadcast %65 : vector<1x128xf32> to vector<8x128xf32>
    %67 = arith.addf %64, %66 : vector<8x128xf32>
    %68 = arith.addf %53, %67 : vector<8x128xf32>
    %c648 = arith.constant 648 : index
    %c0_34 = arith.constant 0 : index
    %69 = vector.load %arg2[%c648, %c0_34] : memref<1536x128xf32, #tpu.memory_space<vmem>>, vector<1x128xf32>
    %c656 = arith.constant 656 : index
    %c0_35 = arith.constant 0 : index
    %70 = vector.load %arg2[%c656, %c0_35] : memref<1536x128xf32, #tpu.memory_space<vmem>>, vector<1x128xf32>
    %cst_36 = arith.constant dense<0.000000e+00> : vector<8xf32>
    %71 = vector.multi_reduction <add>, %68, %cst_36 [1] : vector<8x128xf32> to vector<8xf32>
    %72 = vector.shape_cast %71 : vector<8xf32> to vector<8x1xf32>
    %cst_37 = arith.constant 3.125000e-02 : f32
    %73 = vector.broadcast %cst_37 : f32 to vector<8x1xf32>
    %74 = arith.mulf %72, %73 : vector<8x1xf32>
    %75 = arith.mulf %68, %68 : vector<8x128xf32>
    %cst_38 = arith.constant dense<0.000000e+00> : vector<8xf32>
    %76 = vector.multi_reduction <add>, %75, %cst_38 [1] : vector<8x128xf32> to vector<8xf32>
    %77 = vector.shape_cast %76 : vector<8xf32> to vector<8x1xf32>
    %cst_39 = arith.constant 3.125000e-02 : f32
    %78 = vector.broadcast %cst_39 : f32 to vector<8x1xf32>
    %79 = arith.mulf %77, %78 : vector<8x1xf32>
    %80 = arith.mulf %74, %74 : vector<8x1xf32>
    %81 = arith.subf %79, %80 : vector<8x1xf32>
    %82 = vector.broadcast %74 : vector<8x1xf32> to vector<8x128xf32>
    %83 = arith.subf %68, %82 : vector<8x128xf32>
    %cst_40 = arith.constant 9.99999974E-6 : f32
    %84 = vector.broadcast %cst_40 : f32 to vector<8x1xf32>
    %85 = arith.addf %81, %84 : vector<8x1xf32>
    %86 = math.rsqrt %85 : vector<8x1xf32>
    %87 = vector.broadcast %86 : vector<8x1xf32> to vector<8x128xf32>
    %88 = arith.mulf %83, %87 : vector<8x128xf32>
    %89 = vector.broadcast %69 : vector<1x128xf32> to vector<8x128xf32>
    %90 = arith.mulf %88, %89 : vector<8x128xf32>
    %91 = vector.broadcast %70 : vector<1x128xf32> to vector<8x128xf32>
    %92 = arith.addf %90, %91 : vector<8x128xf32>
    %cst_41 = arith.constant dense<0.000000e+00> : vector<8x128xf32>
    %93 = tpu.matmul %54, %92, %cst_41 {dimension_numbers = #tpu.dot_dimension_numbers<[1], [0], [0], [1], [0, 0, 1, 1], [], []>} : vector<8x8xf32>, vector<8x128xf32>, vector<8x128xf32> -> vector<8x128xf32>
    %c664 = arith.constant 664 : index
    %c0_42 = arith.constant 0 : index
    %94 = vector.load %arg2[%c664, %c0_42] : memref<1536x128xf32, #tpu.memory_space<vmem>>, vector<128x128xf32>
    %cst_43 = arith.constant dense<0.000000e+00> : vector<8x128xf32>
    %95 = tpu.matmul %93, %94, %cst_43 {dimension_numbers = #tpu.dot_dimension_numbers<[1], [0], [0], [1], [0, 0, 1, 1], [], []>} : vector<8x128xf32>, vector<128x128xf32>, vector<8x128xf32> -> vector<8x128xf32>
    %c792 = arith.constant 792 : index
    %c0_44 = arith.constant 0 : index
    %96 = vector.load %arg2[%c792, %c0_44] : memref<1536x128xf32, #tpu.memory_space<vmem>>, vector<1x128xf32>
    %97 = vector.broadcast %96 : vector<1x128xf32> to vector<8x128xf32>
    %98 = arith.addf %95, %97 : vector<8x128xf32>
    %cst_45 = arith.constant 0.000000e+00 : f32
    %99 = vector.broadcast %cst_45 : f32 to vector<8x128xf32>
    %100 = arith.maximumf %98, %99 : vector<8x128xf32>
    %c800 = arith.constant 800 : index
    %c0_46 = arith.constant 0 : index
    %101 = vector.load %arg2[%c800, %c0_46] : memref<1536x128xf32, #tpu.memory_space<vmem>>, vector<128x128xf32>
    %cst_47 = arith.constant dense<0.000000e+00> : vector<8x128xf32>
    %102 = tpu.matmul %100, %101, %cst_47 {dimension_numbers = #tpu.dot_dimension_numbers<[1], [0], [0], [1], [0, 0, 1, 1], [], []>} : vector<8x128xf32>, vector<128x128xf32>, vector<8x128xf32> -> vector<8x128xf32>
    %c928 = arith.constant 928 : index
    %c0_48 = arith.constant 0 : index
    %103 = vector.load %arg2[%c928, %c0_48] : memref<1536x128xf32, #tpu.memory_space<vmem>>, vector<1x128xf32>
    %104 = vector.broadcast %103 : vector<1x128xf32> to vector<8x128xf32>
    %105 = arith.addf %102, %104 : vector<8x128xf32>
    %106 = arith.addf %92, %105 : vector<8x128xf32>
    %c936 = arith.constant 936 : index
    %c0_49 = arith.constant 0 : index
    %107 = vector.load %arg2[%c936, %c0_49] : memref<1536x128xf32, #tpu.memory_space<vmem>>, vector<1x128xf32>
    %c944 = arith.constant 944 : index
    %c0_50 = arith.constant 0 : index
    %108 = vector.load %arg2[%c944, %c0_50] : memref<1536x128xf32, #tpu.memory_space<vmem>>, vector<1x128xf32>
    %cst_51 = arith.constant dense<0.000000e+00> : vector<8xf32>
    %109 = vector.multi_reduction <add>, %106, %cst_51 [1] : vector<8x128xf32> to vector<8xf32>
    %110 = vector.shape_cast %109 : vector<8xf32> to vector<8x1xf32>
    %cst_52 = arith.constant 3.125000e-02 : f32
    %111 = vector.broadcast %cst_52 : f32 to vector<8x1xf32>
    %112 = arith.mulf %110, %111 : vector<8x1xf32>
    %113 = arith.mulf %106, %106 : vector<8x128xf32>
    %cst_53 = arith.constant dense<0.000000e+00> : vector<8xf32>
    %114 = vector.multi_reduction <add>, %113, %cst_53 [1] : vector<8x128xf32> to vector<8xf32>
    %115 = vector.shape_cast %114 : vector<8xf32> to vector<8x1xf32>
    %cst_54 = arith.constant 3.125000e-02 : f32
    %116 = vector.broadcast %cst_54 : f32 to vector<8x1xf32>
    %117 = arith.mulf %115, %116 : vector<8x1xf32>
    %118 = arith.mulf %112, %112 : vector<8x1xf32>
    %119 = arith.subf %117, %118 : vector<8x1xf32>
    %120 = vector.broadcast %112 : vector<8x1xf32> to vector<8x128xf32>
    %121 = arith.subf %106, %120 : vector<8x128xf32>
    %cst_55 = arith.constant 9.99999974E-6 : f32
    %122 = vector.broadcast %cst_55 : f32 to vector<8x1xf32>
    %123 = arith.addf %119, %122 : vector<8x1xf32>
    %124 = math.rsqrt %123 : vector<8x1xf32>
    %125 = vector.broadcast %124 : vector<8x1xf32> to vector<8x128xf32>
    %126 = arith.mulf %121, %125 : vector<8x128xf32>
    %127 = vector.broadcast %107 : vector<1x128xf32> to vector<8x128xf32>
    %128 = arith.mulf %126, %127 : vector<8x128xf32>
    %129 = vector.broadcast %108 : vector<1x128xf32> to vector<8x128xf32>
    %130 = arith.addf %128, %129 : vector<8x128xf32>
    %c1512 = arith.constant 1512 : index
    %c0_56 = arith.constant 0 : index
    %131 = vector.load %arg2[%c1512, %c0_56] : memref<1536x128xf32, #tpu.memory_space<vmem>>, vector<16x8xf32>
    %cst_57 = arith.constant dense<0.000000e+00> : vector<16x128xf32>
    %132 = tpu.matmul %131, %130, %cst_57 {dimension_numbers = #tpu.dot_dimension_numbers<[1], [0], [0], [1], [0, 0, 1, 1], [], []>} : vector<16x8xf32>, vector<8x128xf32>, vector<16x128xf32> -> vector<16x128xf32>
    %133 = arith.addf %49, %132 : vector<16x128xf32>
    %c952 = arith.constant 952 : index
    %c0_58 = arith.constant 0 : index
    %134 = vector.load %arg2[%c952, %c0_58] : memref<1536x128xf32, #tpu.memory_space<vmem>>, vector<128x128xf32>
    %cst_59 = arith.constant dense<0.000000e+00> : vector<16x128xf32>
    %135 = tpu.matmul %133, %134, %cst_59 {dimension_numbers = #tpu.dot_dimension_numbers<[1], [0], [0], [1], [0, 0, 1, 1], [], []>} : vector<16x128xf32>, vector<128x128xf32>, vector<16x128xf32> -> vector<16x128xf32>
    %c1080 = arith.constant 1080 : index
    %c0_60 = arith.constant 0 : index
    %136 = vector.load %arg2[%c1080, %c0_60] : memref<1536x128xf32, #tpu.memory_space<vmem>>, vector<1x128xf32>
    %137 = vector.broadcast %136 : vector<1x128xf32> to vector<16x128xf32>
    %138 = arith.addf %135, %137 : vector<16x128xf32>
    %cst_61 = arith.constant 0.000000e+00 : f32
    %139 = vector.broadcast %cst_61 : f32 to vector<16x128xf32>
    %140 = arith.maximumf %138, %139 : vector<16x128xf32>
    %c1088 = arith.constant 1088 : index
    %c0_62 = arith.constant 0 : index
    %141 = vector.load %arg2[%c1088, %c0_62] : memref<1536x128xf32, #tpu.memory_space<vmem>>, vector<128x128xf32>
    %cst_63 = arith.constant dense<0.000000e+00> : vector<16x128xf32>
    %142 = tpu.matmul %140, %141, %cst_63 {dimension_numbers = #tpu.dot_dimension_numbers<[1], [0], [0], [1], [0, 0, 1, 1], [], []>} : vector<16x128xf32>, vector<128x128xf32>, vector<16x128xf32> -> vector<16x128xf32>
    %c1216 = arith.constant 1216 : index
    %c0_64 = arith.constant 0 : index
    %143 = vector.load %arg2[%c1216, %c0_64] : memref<1536x128xf32, #tpu.memory_space<vmem>>, vector<1x128xf32>
    %144 = vector.broadcast %143 : vector<1x128xf32> to vector<16x128xf32>
    %145 = arith.addf %142, %144 : vector<16x128xf32>
    %cst_65 = arith.constant 0.000000e+00 : f32
    %146 = vector.broadcast %cst_65 : f32 to vector<16x128xf32>
    %147 = arith.maximumf %145, %146 : vector<16x128xf32>
    %c1224 = arith.constant 1224 : index
    %c0_66 = arith.constant 0 : index
    %148 = vector.load %arg2[%c1224, %c0_66] : memref<1536x128xf32, #tpu.memory_space<vmem>>, vector<128x128xf32>
    %cst_67 = arith.constant dense<0.000000e+00> : vector<16x128xf32>
    %149 = tpu.matmul %147, %148, %cst_67 {dimension_numbers = #tpu.dot_dimension_numbers<[1], [0], [0], [1], [0, 0, 1, 1], [], []>} : vector<16x128xf32>, vector<128x128xf32>, vector<16x128xf32> -> vector<16x128xf32>
    %c1352 = arith.constant 1352 : index
    %c0_68 = arith.constant 0 : index
    %150 = vector.load %arg2[%c1352, %c0_68] : memref<1536x128xf32, #tpu.memory_space<vmem>>, vector<1x128xf32>
    %151 = vector.broadcast %150 : vector<1x128xf32> to vector<16x128xf32>
    %152 = arith.addf %149, %151 : vector<16x128xf32>
    %cst_69 = arith.constant 0.000000e+00 : f32
    %153 = vector.broadcast %cst_69 : f32 to vector<16x128xf32>
    %154 = arith.maximumf %152, %153 : vector<16x128xf32>
    %c1360 = arith.constant 1360 : index
    %c0_70 = arith.constant 0 : index
    %155 = vector.load %arg2[%c1360, %c0_70] : memref<1536x128xf32, #tpu.memory_space<vmem>>, vector<128x128xf32>
    %cst_71 = arith.constant dense<0.000000e+00> : vector<16x128xf32>
    %156 = tpu.matmul %154, %155, %cst_71 {dimension_numbers = #tpu.dot_dimension_numbers<[1], [0], [0], [1], [0, 0, 1, 1], [], []>} : vector<16x128xf32>, vector<128x128xf32>, vector<16x128xf32> -> vector<16x128xf32>
    %c1488 = arith.constant 1488 : index
    %c0_72 = arith.constant 0 : index
    %157 = vector.load %arg2[%c1488, %c0_72] : memref<1536x128xf32, #tpu.memory_space<vmem>>, vector<1x128xf32>
    %158 = vector.broadcast %157 : vector<1x128xf32> to vector<16x128xf32>
    %159 = arith.addf %156, %158 : vector<16x128xf32>
    %160 = vector.extract_strided_slice %159 {offsets = [0, 0], sizes = [16, 4], strides = [1, 1]} : vector<16x128xf32> to vector<16x4xf32>
    %cst_73 = arith.constant dense<0xFF800000> : vector<16xf32>
    %161 = vector.multi_reduction <maximumf>, %160, %cst_73 [1] : vector<16x4xf32> to vector<16xf32>
    %162 = vector.shape_cast %161 : vector<16xf32> to vector<16x1xf32>
    %163 = vector.broadcast %162 : vector<16x1xf32> to vector<16x4xf32>
    %164 = arith.subf %160, %163 : vector<16x4xf32>
    %165 = math.exp %164 : vector<16x4xf32>
    %cst_74 = arith.constant dense<0.000000e+00> : vector<16xf32>
    %166 = vector.multi_reduction <add>, %165, %cst_74 [1] : vector<16x4xf32> to vector<16xf32>
    %167 = vector.shape_cast %166 : vector<16xf32> to vector<16x1xf32>
    %168 = tpu.reciprocal %167 : vector<16x1xf32> -> vector<16x1xf32>
    %169 = vector.broadcast %168 : vector<16x1xf32> to vector<16x4xf32>
    %170 = arith.mulf %165, %169 : vector<16x4xf32>
    %c0_75 = arith.constant 0 : index
    %c0_76 = arith.constant 0 : index
    %171 = vector.load %arg3[%c0_75, %c0_76] : memref<16x4xf32, #tpu.memory_space<vmem>>, vector<16x4xf32>
    tpu.vector_store %arg3[%c0_75, %c0_76], %170 {strides = array<i32>} : memref<16x4xf32, #tpu.memory_space<vmem>>, vector<16x4xf32>,
    return
  }
  func.func @transform_0(%arg0: i32) -> (i32, i32) {
    %c0_i32 = arith.constant 0 : i32
    %c0_i32_0 = arith.constant 0 : i32
    %c0_i32_1 = arith.constant 0 : i32
    return %c0_i32, %c0_i32_0 : i32, i32
  }
  func.func @transform_1(%arg0: i32) -> (i32, i32) {
    %c0_i32 = arith.constant 0 : i32
    %c0_i32_0 = arith.constant 0 : i32
    %c0_i32_1 = arith.constant 0 : i32
    return %c0_i32, %c0_i32_0 : i32, i32
  }
  func.func @transform_2(%arg0: i32) -> (i32, i32) {
    %c0_i32 = arith.constant 0 : i32
    %c0_i32_0 = arith.constant 0 : i32
    %c0_i32_1 = arith.constant 0 : i32
    return %c0_i32, %c0_i32_0 : i32, i32
  }
}

</mosaic_0001>

<llo_original>
// kernel: tpu_custom_call.1
$region0: #{tpu_custom_call.1}
  #allocation0 [shape = 'u32[]', space=smem, size = 0x4, offset = 0x4, fixed_abs, tag = 'smem constant byte address 0x4 - core index']
  #allocation1 [shape = 'u32[144,128]{1,0:T(1,128)}', space=vmem, size = 0x12000, scoped, tag = 'internal scratch']
  %s0 = inlined_call_operand.hbm [shape: f32[16,30], index: 0, kind: input, shape index: {}]
  %s1 = inlined_call_operand.hbm [shape: f32[1536,128], index: 1, kind: input, shape index: {}]
  %s2 = inlined_call_operand.vmem [shape: f32[16,4], index: 2, kind: output, shape index: {}]
  %s3 = sld [smem:[#allocation0]]
  $region26: #{tpu_custom_call.1} parent=0
    _
  %s5 = ssub.s32 1, %s3
  %s6 = scalar_select 0, %s5, %s3
  $region1: #{tpu_custom_call.1} parent=0
    #allocation2 [shape = 'u8[8192]{0}', space=vmem, size = 0x2000, scoped, tag = 'input window, operand 0, single buffered']
    #allocation3 [shape = 's32[1]{0}', space=sflag, size = 0x4, scoped, tag = 'scoped memory for tpu_custom_call.1']
    #allocation4 [shape = 'u8[786432]{0}', space=vmem, size = 0xc0000, scoped, tag = 'input window, operand 1, single buffered']
    #allocation5 [shape = 's32[1]{0}', space=sflag, size = 0x4, scoped, tag = 'scoped memory for tpu_custom_call.1']
    %7 = vsyncpa [#allocation3], 0
    %8 = vsyncpa [#allocation5], 0
    // Predicated region
    $region2: #{tpu_custom_call.1} parent=1 // pred_check
      _
    $region3: #{tpu_custom_call.1} parent=1 // pred_check_branch
      %10 = sbr.rel (0) target = $region5
    $region4: #{tpu_custom_call.1} parent=1 // pred_region
      %s12 = ssub.s32 256, 256
      %13 = vsyncadd [#allocation3], %s12
      %s14 = sshll.u32 [#allocation2], 4
      %s15 = int_to_ptr.vmem [resolvable:$true] %s14
      %20 = dma.hbm_to_vmem [thread:$0]  %s0, 256, %s15, [#allocation3], 128, 128, 8
    $region5: #{tpu_custom_call.1} parent=1 // pred_fallthru
      _
    // Predicated region
    $region6: #{tpu_custom_call.1} parent=1 // pred_check
      _
    $region7: #{tpu_custom_call.1} parent=1 // pred_check_branch
      %22 = sbr.rel (0) target = $region9
    $region8: #{tpu_custom_call.1} parent=1 // pred_region
      %s24 = ssub.s32 24576, 24576
      %25 = vsyncadd [#allocation5], %s24
      %s26 = sshll.u32 [#allocation4], 4
      %s27 = int_to_ptr.vmem [resolvable:$true] %s26
      %32 = dma.hbm_to_vmem [thread:$0]  %s1, 24576, %s27, [#allocation5], 128, 128, 8
    $region9: #{tpu_custom_call.1} parent=1 // pred_fallthru
      _
    // Predicated region
    $region10: #{tpu_custom_call.1} parent=1 // pred_check
      _
    $region11: #{tpu_custom_call.1} parent=1 // pred_check_branch
      %34 = sbr.rel (0) target = $region13
    $region12: #{tpu_custom_call.1} parent=1 // pred_region
      %35 = dma.done [#allocation3], 256
    $region13: #{tpu_custom_call.1} parent=1 // pred_fallthru
      _
    // Predicated region
    $region14: #{tpu_custom_call.1} parent=1 // pred_check
      _
    $region15: #{tpu_custom_call.1} parent=1 // pred_check_branch
      %37 = sbr.rel (0) target = $region17
    $region16: #{tpu_custom_call.1} parent=1 // pred_region
      %38 = dma.done [#allocation5], 24576
    $region17: #{tpu_custom_call.1} parent=1 // pred_fallthru
      _
    %v39 = vld [vmem:[#allocation2] sm:$0xff]
    %v40 = vld [vmem:[#allocation2 + $0x8] sm:$0xff]
    %v41 = vld [vmem:[#allocation4 + $0x5f8] sm:$0xff]
    %v42 = vld [vmem:[#allocation4] sm:$0xff]
    %v43 = vld [vmem:[#allocation4 + $0x8] sm:$0xff]
    %v44 = vld [vmem:[#allocation4 + $0x10] sm:$0xff]
    %v45 = vld [vmem:[#allocation4 + $0x18] sm:$0x3f]
    %v46 = vld [vmem:[#allocation4 + $0x20] sm:$0x1]
    %v47 = vlaneseq
    %v48 = vshrl.u32 %v47, 7
    %v49 = vsub.s32 0, %v48
    %v50 = vrot.slane %v46, %v49
    %vm51 = vcmask 244736
    %v53 = vsel %vm51, %v39, 0
    %v56 = vsel %vm51, %v40, 0
    %vm58 = vcmask 1045504
    %v60 = vsel %vm58, %v45, 0
    %62 = vmatprep.subr.mxu0 0.0
    %63 = vmatpush1.msra.mxu0 %v42
    %64 = vmatprep.subr.mxu0 0.0
    %65 = vmatpush1.msra.mxu0 %v43
    %66 = vmatprep.subr.mxu0 0.0
    %67 = vmatpush1.msra.mxu0 %v44
    %68 = vmatprep.subr.mxu0 0.0
    %69 = vmatpush1.msra.mxu0 %v60
    %70 = vmatprep.subr.mxu0 0.0
    %71 = vmatpush1.msra.mxu0 0.0
    %72 = vmatprep.subr.mxu0 0.0
    %73 = vmatpush1.msra.mxu0 0.0
    %74 = vmatprep.subr.mxu0 0.0
    %75 = vmatpush1.msra.mxu0 0.0
    %76 = vmatprep.subr.mxu0 0.0
    %77 = vmatpush1.msra.mxu0 0.0
    %78 = vmatprep.subr.mxu0 0.0
    %79 = vmatpush1.msra.mxu0 0.0
    %80 = vmatprep.subr.mxu0 0.0
    %81 = vmatpush1.msra.mxu0 0.0
    %82 = vmatprep.subr.mxu0 0.0
    %83 = vmatpush1.msra.mxu0 0.0
    %84 = vmatprep.subr.mxu0 0.0
    %85 = vmatpush1.msra.mxu0 0.0
    %86 = vmatprep.subr.mxu0 0.0
    %87 = vmatpush1.msra.mxu0 0.0
    %88 = vmatprep.subr.mxu0 0.0
    %89 = vmatpush1.msra.mxu0 0.0
    %90 = vmatprep.subr.mxu0 0.0
    %91 = vmatpush1.msra.mxu0 0.0
    %92 = vmatprep.subr.mxu0 0.0
    %93 = vmatpush1.msra.mxu0 0.0
    %94 = vmatprep.subr.mxu0 0.0
    %95 = vmatpush1.msra.mxu0 0.0
    %96 = vmatprep.subr.mxu0 0.0
    %97 = vmatpush1.msra.mxu0 0.0
    %98 = vmatprep.subr.mxu0 0.0
    %99 = vmatpush1.msra.mxu0 0.0
    %100 = vmatprep.subr.mxu0 0.0
    %101 = vmatpush1.msra.mxu0 0.0
    %102 = vmatprep.subr.mxu0 0.0
    %103 = vmatpush1.msra.mxu0 0.0
    %104 = vmatprep.subr.mxu0 0.0
    %105 = vmatpush1.msra.mxu0 0.0
    %106 = vmatprep.subr.mxu0 0.0
    %107 = vmatpush1.msra.mxu0 0.0
    %108 = vmatprep.subr.mxu0 0.0
    %109 = vmatpush1.msra.mxu0 0.0
    %110 = vmatprep.subr.mxu0 0.0
    %111 = vmatpush1.msra.mxu0 0.0
    %112 = vmatprep.subr.mxu0 0.0
    %113 = vmatpush1.msra.mxu0 0.0
    %114 = vmatprep.subr.mxu0 0.0
    %115 = vmatpush1.msra.mxu0 0.0
    %116 = vmatprep.subr.mxu0 0.0
    %117 = vmatpush1.msra.mxu0 0.0
    %118 = vmatprep.subr.mxu0 0.0
    %119 = vmatpush1.msra.mxu0 0.0
    %120 = vmatprep.subr.mxu0 0.0
    %121 = vmatpush1.msra.mxu0 0.0
    %122 = vmatprep.subr.mxu0 0.0
    %123 = vmatpush1.msra.mxu0 0.0
    %124 = vmatprep.subr.mxu0 0.0
    %125 = vmatpush1.msra.mxu0 0.0
    %126 = vmatprep.mubr.f32.mxu0 0.0
    %127 = vmatmul.mubr.f32.gmra.mrb[0].mxu0 %v53
    %v128 = vpop.f32.mrb[0].mxu0
    %v129 = vadd.f32 %v50, %v128
    %v130 = vpop.f32.mrb[0].mxu0
    %131 = vmatprep.mubr.f32.mxu0 0.0
    %132 = vmatmul.mubr.f32.gmra.mrb[0].mxu0 %v56
    %v133 = vpop.f32.mrb[0].mxu0
    %v134 = vadd.f32 %v50, %v133
    %v135 = vpop.f32.mrb[0].mxu0
    %136 = vdwg.mxu0
    %v137 = vmax.f32 %v129, 0.0
    %v138 = vmax.f32 %v134, 0.0
    %v139 = vld [vmem:[#allocation4 + $0xb0] sm:$0x7]
    %v140 = vld [vmem:[#allocation4 + $0xb8] sm:$0x1]
    %v141 = vlaneseq
    %v142 = vshrl.u32 %v141, 7
    %v143 = vsub.s32 0, %v142
    %v144 = vrot.slane %v140, %v143
    %vm145 = vcmask 23552
    %v147 = vsel %vm145, %v41, 0
    %vm149 = vcmask 1042432
    %v151 = vsel %vm149, %v139, 0
    %153 = vmatprep.subr.mxu0 0.0
    %154 = vmatpush1.msra.mxu0 %v151
    %155 = vmatprep.subr.mxu0 0.0
    %156 = vmatpush1.msra.mxu0 0.0
    %157 = vmatprep.subr.mxu0 0.0
    %158 = vmatpush1.msra.mxu0 0.0
    %159 = vmatprep.subr.mxu0 0.0
    %160 = vmatpush1.msra.mxu0 0.0
    %161 = vmatprep.subr.mxu0 0.0
    %162 = vmatpush1.msra.mxu0 0.0
    %163 = vmatprep.subr.mxu0 0.0
    %164 = vmatpush1.msra.mxu0 0.0
    %165 = vmatprep.subr.mxu0 0.0
    %166 = vmatpush1.msra.mxu0 0.0
    %167 = vmatprep.subr.mxu0 0.0
    %168 = vmatpush1.msra.mxu0 0.0
    %169 = vmatprep.subr.mxu0 0.0
    %170 = vmatpush1.msra.mxu0 0.0
    %171 = vmatprep.subr.mxu0 0.0
    %172 = vmatpush1.msra.mxu0 0.0
    %173 = vmatprep.subr.mxu0 0.0
    %174 = vmatpush1.msra.mxu0 0.0
    %175 = vmatprep.subr.mxu0 0.0
    %176 = vmatpush1.msra.mxu0 0.0
    %177 = vmatprep.subr.mxu0 0.0
    %178 = vmatpush1.msra.mxu0 0.0
    %179 = vmatprep.subr.mxu0 0.0
    %180 = vmatpush1.msra.mxu0 0.0
    %181 = vmatprep.subr.mxu0 0.0
    %182 = vmatpush1.msra.mxu0 0.0
    %183 = vmatprep.subr.mxu0 0.0
    %184 = vmatpush1.msra.mxu0 0.0
    %185 = vmatprep.subr.mxu0 0.0
    %186 = vmatpush1.msra.mxu0 0.0
    %187 = vmatprep.subr.mxu0 0.0
    %188 = vmatpush1.msra.mxu0 0.0
    %189 = vmatprep.subr.mxu0 0.0
    %190 = vmatpush1.msra.mxu0 0.0
    %191 = vmatprep.subr.mxu0 0.0
    %192 = vmatpush1.msra.mxu0 0.0
    %193 = vmatprep.subr.mxu0 0.0
    %194 = vmatpush1.msra.mxu0 0.0
    %195 = vmatprep.subr.mxu0 0.0
    %196 = vmatpush1.msra.mxu0 0.0
    %197 = vmatprep.subr.mxu0 0.0
    %198 = vmatpush1.msra.mxu0 0.0
    %199 = vmatprep.subr.mxu0 0.0
    %200 = vmatpush1.msra.mxu0 0.0
    %201 = vmatprep.subr.mxu0 0.0
    %202 = vmatpush1.msra.mxu0 0.0
    %203 = vmatprep.subr.mxu0 0.0
    %204 = vmatpush1.msra.mxu0 0.0
    %205 = vmatprep.subr.mxu0 0.0
    %206 = vmatpush1.msra.mxu0 0.0
    %207 = vmatprep.subr.mxu0 0.0
    %208 = vmatpush1.msra.mxu0 0.0
    %209 = vmatprep.subr.mxu0 0.0
    %210 = vmatpush1.msra.mxu0 0.0
    %211 = vmatprep.subr.mxu0 0.0
    %212 = vmatpush1.msra.mxu0 0.0
    %213 = vmatprep.subr.mxu0 0.0
    %214 = vmatpush1.msra.mxu0 0.0
    %215 = vmatprep.subr.mxu0 0.0
    %216 = vmatpush1.msra.mxu0 0.0
    %217 = vmatprep.mubr.f32.mxu0 0.0
    %218 = vmatmul.mubr.f32.gmra.mrb[0].mxu0 %v147
    %v219 = vpop.f32.mrb[0].mxu0
    %v220 = vadd.f32 %v144, %v219
    %v221 = vpop.f32.mrb[0].mxu0
    %222 = vdwg.mxu0
    %v223 = vmax.f32 %v220, 0.0
    %v224 = vld [vmem:[#allocation4 + $0x28] sm:$0xff]
    %v225 = vld [vmem:[#allocation4 + $0x30] sm:$0xff]
    %v226 = vld [vmem:[#allocation4 + $0x38] sm:$0xff]
    %v227 = vld [vmem:[#allocation4 + $0x40] sm:$0xff]
    %v228 = vld [vmem:[#allocation4 + $0x48] sm:$0xff]
    %v229 = vld [vmem:[#allocation4 + $0x50] sm:$0xff]
    %v230 = vld [vmem:[#allocation4 + $0x58] sm:$0xff]
    %v231 = vld [vmem:[#allocation4 + $0x60] sm:$0xff]
    %v232 = vld [vmem:[#allocation4 + $0x68] sm:$0xff]
    %v233 = vld [vmem:[#allocation4 + $0x70] sm:$0xff]
    %v234 = vld [vmem:[#allocation4 + $0x78] sm:$0xff]
    %v235 = vld [vmem:[#allocation4 + $0x80] sm:$0xff]
    %v236 = vld [vmem:[#allocation4 + $0x88] sm:$0xff]
    %v237 = vld [vmem:[#allocation4 + $0x90] sm:$0xff]
    %v238 = vld [vmem:[#allocation4 + $0x98] sm:$0xff]
    %v239 = vld [vmem:[#allocation4 + $0xa0] sm:$0xff]
    %v240 = vld [vmem:[#allocation4 + $0xa8] sm:$0x1]
    %v241 = vlaneseq
    %v242 = vshrl.u32 %v241, 7
    %v243 = vsub.s32 0, %v242
    %v244 = vrot.slane %v240, %v243
    %245 = vmatprep.subr.mxu0 0.0
    %246 = vmatpush1.msra.mxu0 %v224
    %247 = vmatprep.subr.mxu0 0.0
    %248 = vmatpush1.msra.mxu0 %v225
    %249 = vmatprep.subr.mxu0 0.0
    %250 = vmatpush1.msra.mxu0 %v226
    %251 = vmatprep.subr.mxu0 0.0
    %252 = vmatpush1.msra.mxu0 %v227
    %253 = vmatprep.subr.mxu0 0.0
    %254 = vmatpush1.msra.mxu0 %v228
    %255 = vmatprep.subr.mxu0 0.0
    %256 = vmatpush1.msra.mxu0 %v229
    %257 = vmatprep.subr.mxu0 0.0
    %258 = vmatpush1.msra.mxu0 %v230
    %259 = vmatprep.subr.mxu0 0.0
    %260 = vmatpush1.msra.mxu0 %v231
    %261 = vmatprep.subr.mxu0 0.0
    %262 = vmatpush1.msra.mxu0 %v232
    %263 = vmatprep.subr.mxu0 0.0
    %264 = vmatpush1.msra.mxu0 %v233
    %265 = vmatprep.subr.mxu0 0.0
    %266 = vmatpush1.msra.mxu0 %v234
    %267 = vmatprep.subr.mxu0 0.0
    %268 = vmatpush1.msra.mxu0 %v235
    %269 = vmatprep.subr.mxu0 0.0
    %270 = vmatpush1.msra.mxu0 %v236
    %271 = vmatprep.subr.mxu0 0.0
    %272 = vmatpush1.msra.mxu0 %v237
    %273 = vmatprep.subr.mxu0 0.0
    %274 = vmatpush1.msra.mxu0 %v238
    %275 = vmatprep.subr.mxu0 0.0
    %276 = vmatpush1.msra.mxu0 %v239
    %277 = vmatprep.subr.mxu0 0.0
    %278 = vmatpush1.msra.mxu0 0.0
    %279 = vmatprep.subr.mxu0 0.0
    %280 = vmatpush1.msra.mxu0 0.0
    %281 = vmatprep.subr.mxu0 0.0
    %282 = vmatpush1.msra.mxu0 0.0
    %283 = vmatprep.subr.mxu0 0.0
    %284 = vmatpush1.msra.mxu0 0.0
    %285 = vmatprep.subr.mxu0 0.0
    %286 = vmatpush1.msra.mxu0 0.0
    %287 = vmatprep.subr.mxu0 0.0
    %288 = vmatpush1.msra.mxu0 0.0
    %289 = vmatprep.subr.mxu0 0.0
    %290 = vmatpush1.msra.mxu0 0.0
    %291 = vmatprep.subr.mxu0 0.0
    %292 = vmatpush1.msra.mxu0 0.0
    %293 = vmatprep.subr.mxu0 0.0
    %294 = vmatpush1.msra.mxu0 0.0
    %295 = vmatprep.subr.mxu0 0.0
    %296 = vmatpush1.msra.mxu0 0.0
    %297 = vmatprep.subr.mxu0 0.0
    %298 = vmatpush1.msra.mxu0 0.0
    %299 = vmatprep.subr.mxu0 0.0
    %300 = vmatpush1.msra.mxu0 0.0
    %301 = vmatprep.subr.mxu0 0.0
    %302 = vmatpush1.msra.mxu0 0.0
    %303 = vmatprep.subr.mxu0 0.0
    %304 = vmatpush1.msra.mxu0 0.0
    %305 = vmatprep.subr.mxu0 0.0
    %306 = vmatpush1.msra.mxu0 0.0
    %307 = vmatprep.subr.mxu0 0.0
    %308 = vmatpush1.msra.mxu0 0.0
    %309 = vmatprep.mubr.f32.mxu0 0.0
    %310 = vmatmul.mubr.f32.gmra.mrb[0].mxu0 %v137
    %v311 = vpop.f32.mrb[0].mxu0
    %v312 = vadd.f32 %v244, %v311
    %v313 = vpop.f32.mrb[0].mxu0
    %314 = vmatprep.mubr.f32.mxu0 0.0
    %315 = vmatmul.mubr.f32.gmra.mrb[0].mxu0 %v138
    %v316 = vpop.f32.mrb[0].mxu0
    %v317 = vadd.f32 %v244, %v316
    %v318 = vpop.f32.mrb[0].mxu0
    %319 = vdwg.mxu0
    %v320 = vld [vmem:[#allocation4 + $0xc0] sm:$0xff]
    %v321 = vld [vmem:[#allocation4 + $0xc8] sm:$0xff]
    %v322 = vld [vmem:[#allocation4 + $0xd0] sm:$0xff]
    %v323 = vld [vmem:[#allocation4 + $0xd8] sm:$0xff]
    %v324 = vld [vmem:[#allocation4 + $0xe0] sm:$0xff]
    %v325 = vld [vmem:[#allocation4 + $0xe8] sm:$0xff]
    %v326 = vld [vmem:[#allocation4 + $0xf0] sm:$0xff]
    %v327 = vld [vmem:[#allocation4 + $0xf8] sm:$0xff]
    %v328 = vld [vmem:[#allocation4 + $0x100] sm:$0xff]
    %v329 = vld [vmem:[#allocation4 + $0x108] sm:$0xff]
    %v330 = vld [vmem:[#allocation4 + $0x110] sm:$0xff]
    %v331 = vld [vmem:[#allocation4 + $0x118] sm:$0xff]
    %v332 = vld [vmem:[#allocation4 + $0x120] sm:$0xff]
    %v333 = vld [vmem:[#allocation4 + $0x128] sm:$0xff]
    %v334 = vld [vmem:[#allocation4 + $0x130] sm:$0xff]
    %v335 = vld [vmem:[#allocation4 + $0x138] sm:$0xff]
    %v336 = vld [vmem:[#allocation4 + $0x140] sm:$0x1]
    %v337 = vlaneseq
    %v338 = vshrl.u32 %v337, 7
    %v339 = vsub.s32 0, %v338
    %v340 = vrot.slane %v336, %v339
    %341 = vmatprep.subr.mxu0 0.0
    %342 = vmatpush1.msra.mxu0 %v320
    %343 = vmatprep.subr.mxu0 0.0
    %344 = vmatpush1.msra.mxu0 %v321
    %345 = vmatprep.subr.mxu0 0.0
    %346 = vmatpush1.msra.mxu0 %v322
    %347 = vmatprep.subr.mxu0 0.0
    %348 = vmatpush1.msra.mxu0 %v323
    %349 = vmatprep.subr.mxu0 0.0
    %350 = vmatpush1.msra.mxu0 %v324
    %351 = vmatprep.subr.mxu0 0.0
    %352 = vmatpush1.msra.mxu0 %v325
    %353 = vmatprep.subr.mxu0 0.0
    %354 = vmatpush1.msra.mxu0 %v326
    %355 = vmatprep.subr.mxu0 0.0
    %356 = vmatpush1.msra.mxu0 %v327
    %357 = vmatprep.subr.mxu0 0.0
    %358 = vmatpush1.msra.mxu0 %v328
    %359 = vmatprep.subr.mxu0 0.0
    %360 = vmatpush1.msra.mxu0 %v329
    %361 = vmatprep.subr.mxu0 0.0
    %362 = vmatpush1.msra.mxu0 %v330
    %363 = vmatprep.subr.mxu0 0.0
    %364 = vmatpush1.msra.mxu0 %v331
    %365 = vmatprep.subr.mxu0 0.0
    %366 = vmatpush1.msra.mxu0 %v332
    %367 = vmatprep.subr.mxu0 0.0
    %368 = vmatpush1.msra.mxu0 %v333
    %369 = vmatprep.subr.mxu0 0.0
    %370 = vmatpush1.msra.mxu0 %v334
    %371 = vmatprep.subr.mxu0 0.0
    %372 = vmatpush1.msra.mxu0 %v335
    %373 = vmatprep.subr.mxu0 0.0
    %374 = vmatpush1.msra.mxu0 0.0
    %375 = vmatprep.subr.mxu0 0.0
    %376 = vmatpush1.msra.mxu0 0.0
    %377 = vmatprep.subr.mxu0 0.0
    %378 = vmatpush1.msra.mxu0 0.0
    %379 = vmatprep.subr.mxu0 0.0
    %380 = vmatpush1.msra.mxu0 0.0
    %381 = vmatprep.subr.mxu0 0.0
    %382 = vmatpush1.msra.mxu0 0.0
    %383 = vmatprep.subr.mxu0 0.0
    %384 = vmatpush1.msra.mxu0 0.0
    %385 = vmatprep.subr.mxu0 0.0
    %386 = vmatpush1.msra.mxu0 0.0
    %387 = vmatprep.subr.mxu0 0.0
    %388 = vmatpush1.msra.mxu0 0.0
    %389 = vmatprep.subr.mxu0 0.0
    %390 = vmatpush1.msra.mxu0 0.0
    %391 = vmatprep.subr.mxu0 0.0
    %392 = vmatpush1.msra.mxu0 0.0
    %393 = vmatprep.subr.mxu0 0.0
    %394 = vmatpush1.msra.mxu0 0.0
    %395 = vmatprep.subr.mxu0 0.0
    %396 = vmatpush1.msra.mxu0 0.0
    %397 = vmatprep.subr.mxu0 0.0
    %398 = vmatpush1.msra.mxu0 0.0
    %399 = vmatprep.subr.mxu0 0.0
    %400 = vmatpush1.msra.mxu0 0.0
    %401 = vmatprep.subr.mxu0 0.0
    %402 = vmatpush1.msra.mxu0 0.0
    %403 = vmatprep.subr.mxu0 0.0
    %404 = vmatpush1.msra.mxu0 0.0
    %405 = vmatprep.mubr.f32.mxu0 0.0
    %406 = vmatmul.mubr.f32.gmra.mrb[0].mxu0 %v223
    %v407 = vpop.f32.mrb[0].mxu0
    %v408 = vadd.f32 %v340, %v407
    %v409 = vpop.f32.mrb[0].mxu0
    %410 = vdwg.mxu0
    %v411 = vld [vmem:[#allocation4 + $0x148] sm:$0xff]
    %v412 = vld [vmem:[#allocation4 + $0x150] sm:$0xff]
    %v413 = vld [vmem:[#allocation4 + $0x158] sm:$0xff]
    %v414 = vld [vmem:[#allocation4 + $0x160] sm:$0xff]
    %v415 = vld [vmem:[#allocation4 + $0x168] sm:$0xff]
    %v416 = vld [vmem:[#allocation4 + $0x170] sm:$0xff]
    %417 = vadd.xlane.f32.xlu0 %v312
    %v418 = vpop.xlane.xlu0 %417
    %419 = vadd.xlane.f32.xlu0 %v317
    %v420 = vpop.xlane.xlu0 %419
    %421 = vadd.xlane.f32.xlu0 %v408
    %v422 = vpop.xlane.xlu0 %421
    %v423 = vmul.f32 %v418, 0.03125
    %v424 = vmul.f32 %v420, 0.03125
    %v425 = vmul.f32 %v422, 0.03125
    %v426 = vmul.f32 %v312, %v312
    %v427 = vmul.f32 %v317, %v317
    %v428 = vmul.f32 %v408, %v408
    %429 = vadd.xlane.f32.xlu0 %v426
    %v430 = vpop.xlane.xlu0 %429
    %431 = vadd.xlane.f32.xlu0 %v427
    %v432 = vpop.xlane.xlu0 %431
    %433 = vadd.xlane.f32.xlu0 %v428
    %v434 = vpop.xlane.xlu0 %433
    %v435 = vmul.f32 %v430, 0.03125
    %v436 = vmul.f32 %v432, 0.03125
    %v437 = vmul.f32 %v434, 0.03125
    %v438 = vmul.f32 %v423, %v423
    %v439 = vmul.f32 %v424, %v424
    %v440 = vmul.f32 %v425, %v425
    %v441 = vsub.f32 %v435, %v438
    %v442 = vsub.f32 %v436, %v439
    %v443 = vsub.f32 %v437, %v440
    %v444 = vsub.f32 %v312, %v423
    %v445 = vsub.f32 %v317, %v424
    %v446 = vsub.f32 %v408, %v425
    %v447 = vadd.f32 %v441, 1e-05
    %v448 = vadd.f32 %v442, 1e-05
    %v449 = vadd.f32 %v443, 1e-05
    %v450 = vrsqrt.pop %v447
    %v451 = vrsqrt.pop %v448
    %v452 = vrsqrt.pop %v449
    %v453 = vmul.f32 %v444, %v450
    %v454 = vmul.f32 %v445, %v451
    %v455 = vmul.f32 %v446, %v452
    %v456 = vmul.f32 %v453, %v411
    %v457 = vmul.f32 %v454, %v412
    %v458 = vmul.f32 %v455, %v413
    %v459 = vadd.f32 %v456, %v414
    %v460 = vadd.f32 %v457, %v415
    %v461 = vadd.f32 %v458, %v416
    %v462 = vld [vmem:[#allocation4 + $0x5d8] sm:$0xff]
    %vm463 = vcmask 130048
    %v465 = vsel %vm463, %v462, 0
    %467 = vmatprep.subr.mxu0 0.0
    %468 = vmatpush1.msra.mxu0 %v459
    %469 = vmatprep.subr.mxu0 0.0
    %470 = vmatpush1.msra.mxu0 %v460
    %471 = vmatprep.subr.mxu0 0.0
    %472 = vmatpush1.msra.mxu0 0.0
    %473 = vmatprep.subr.mxu0 0.0
    %474 = vmatpush1.msra.mxu0 0.0
    %475 = vmatprep.subr.mxu0 0.0
    %476 = vmatpush1.msra.mxu0 0.0
    %477 = vmatprep.subr.mxu0 0.0
    %478 = vmatpush1.msra.mxu0 0.0
    %479 = vmatprep.subr.mxu0 0.0
    %480 = vmatpush1.msra.mxu0 0.0
    %481 = vmatprep.subr.mxu0 0.0
    %482 = vmatpush1.msra.mxu0 0.0
    %483 = vmatprep.subr.mxu0 0.0
    %484 = vmatpush1.msra.mxu0 0.0
    %485 = vmatprep.subr.mxu0 0.0
    %486 = vmatpush1.msra.mxu0 0.0
    %487 = vmatprep.subr.mxu0 0.0
    %488 = vmatpush1.msra.mxu0 0.0
    %489 = vmatprep.subr.mxu0 0.0
    %490 = vmatpush1.msra.mxu0 0.0
    %491 = vmatprep.subr.mxu0 0.0
    %492 = vmatpush1.msra.mxu0 0.0
    %493 = vmatprep.subr.mxu0 0.0
    %494 = vmatpush1.msra.mxu0 0.0
    %495 = vmatprep.subr.mxu0 0.0
    %496 = vmatpush1.msra.mxu0 0.0
    %497 = vmatprep.subr.mxu0 0.0
    %498 = vmatpush1.msra.mxu0 0.0
    %499 = vmatprep.subr.mxu0 0.0
    %500 = vmatpush1.msra.mxu0 0.0
    %501 = vmatprep.subr.mxu0 0.0
    %502 = vmatpush1.msra.mxu0 0.0
    %503 = vmatprep.subr.mxu0 0.0
    %504 = vmatpush1.msra.mxu0 0.0
    %505 = vmatprep.subr.mxu0 0.0
    %506 = vmatpush1.msra.mxu0 0.0
    %507 = vmatprep.subr.mxu0 0.0
    %508 = vmatpush1.msra.mxu0 0.0
    %509 = vmatprep.subr.mxu0 0.0
    %510 = vmatpush1.msra.mxu0 0.0
    %511 = vmatprep.subr.mxu0 0.0
    %512 = vmatpush1.msra.mxu0 0.0
    %513 = vmatprep.subr.mxu0 0.0
    %514 = vmatpush1.msra.mxu0 0.0
    %515 = vmatprep.subr.mxu0 0.0
    %516 = vmatpush1.msra.mxu0 0.0
    %517 = vmatprep.subr.mxu0 0.0
    %518 = vmatpush1.msra.mxu0 0.0
    %519 = vmatprep.subr.mxu0 0.0
    %520 = vmatpush1.msra.mxu0 0.0
    %521 = vmatprep.subr.mxu0 0.0
    %522 = vmatpush1.msra.mxu0 0.0
    %523 = vmatprep.subr.mxu0 0.0
    %524 = vmatpush1.msra.mxu0 0.0
    %525 = vmatprep.subr.mxu0 0.0
    %526 = vmatpush1.msra.mxu0 0.0
    %527 = vmatprep.subr.mxu0 0.0
    %528 = vmatpush1.msra.mxu0 0.0
    %529 = vmatprep.subr.mxu0 0.0
    %530 = vmatpush1.msra.mxu0 0.0
    %531 = vmatprep.mubr.f32.mxu0 0.0
    %532 = vmatmul.mubr.f32.gmra.mrb[0].mxu0 %v465
    %v533 = vpop.f32.mrb[0].mxu0
    %v534 = vadd.f32 0.0, %v533
    %v535 = vpop.f32.mrb[0].mxu0
    %536 = vdwg.mxu0
    %v537 = vadd.f32 %v461, %v534
    %v538 = vld [vmem:[#allocation4 + $0x5e0] sm:$0xff]
    %vm539 = vcmask 64512
    %v541 = vsel %vm539, %v538, 0
    %543 = vmatprep.subr.mxu0 0.0
    %544 = vmatpush1.msra.mxu0 %v537
    %545 = vmatprep.subr.mxu0 0.0
    %546 = vmatpush1.msra.mxu0 0.0
    %547 = vmatprep.subr.mxu0 0.0
    %548 = vmatpush1.msra.mxu0 0.0
    %549 = vmatprep.subr.mxu0 0.0
    %550 = vmatpush1.msra.mxu0 0.0
    %551 = vmatprep.subr.mxu0 0.0
    %552 = vmatpush1.msra.mxu0 0.0
    %553 = vmatprep.subr.mxu0 0.0
    %554 = vmatpush1.msra.mxu0 0.0
    %555 = vmatprep.subr.mxu0 0.0
    %556 = vmatpush1.msra.mxu0 0.0
    %557 = vmatprep.subr.mxu0 0.0
    %558 = vmatpush1.msra.mxu0 0.0
    %559 = vmatprep.subr.mxu0 0.0
    %560 = vmatpush1.msra.mxu0 0.0
    %561 = vmatprep.subr.mxu0 0.0
    %562 = vmatpush1.msra.mxu0 0.0
    %563 = vmatprep.subr.mxu0 0.0
    %564 = vmatpush1.msra.mxu0 0.0
    %565 = vmatprep.subr.mxu0 0.0
    %566 = vmatpush1.msra.mxu0 0.0
    %567 = vmatprep.subr.mxu0 0.0
    %568 = vmatpush1.msra.mxu0 0.0
    %569 = vmatprep.subr.mxu0 0.0
    %570 = vmatpush1.msra.mxu0 0.0
    %571 = vmatprep.subr.mxu0 0.0
    %572 = vmatpush1.msra.mxu0 0.0
    %573 = vmatprep.subr.mxu0 0.0
    %574 = vmatpush1.msra.mxu0 0.0
    %575 = vmatprep.subr.mxu0 0.0
    %576 = vmatpush1.msra.mxu0 0.0
    %577 = vmatprep.subr.mxu0 0.0
    %578 = vmatpush1.msra.mxu0 0.0
    %579 = vmatprep.subr.mxu0 0.0
    %580 = vmatpush1.msra.mxu0 0.0
    %581 = vmatprep.subr.mxu0 0.0
    %582 = vmatpush1.msra.mxu0 0.0
    %583 = vmatprep.subr.mxu0 0.0
    %584 = vmatpush1.msra.mxu0 0.0
    %585 = vmatprep.subr.mxu0 0.0
    %586 = vmatpush1.msra.mxu0 0.0
    %587 = vmatprep.subr.mxu0 0.0
    %588 = vmatpush1.msra.mxu0 0.0
    %589 = vmatprep.subr.mxu0 0.0
    %590 = vmatpush1.msra.mxu0 0.0
    %591 = vmatprep.subr.mxu0 0.0
    %592 = vmatpush1.msra.mxu0 0.0
    %593 = vmatprep.subr.mxu0 0.0
    %594 = vmatpush1.msra.mxu0 0.0
    %595 = vmatprep.subr.mxu0 0.0
    %596 = vmatpush1.msra.mxu0 0.0
    %597 = vmatprep.subr.mxu0 0.0
    %598 = vmatpush1.msra.mxu0 0.0
    %599 = vmatprep.subr.mxu0 0.0
    %600 = vmatpush1.msra.mxu0 0.0
    %601 = vmatprep.subr.mxu0 0.0
    %602 = vmatpush1.msra.mxu0 0.0
    %603 = vmatprep.subr.mxu0 0.0
    %604 = vmatpush1.msra.mxu0 0.0
    %605 = vmatprep.subr.mxu0 0.0
    %606 = vmatpush1.msra.mxu0 0.0
    %607 = vmatprep.mubr.f32.mxu0 0.0
    %608 = vmatmul.mubr.f32.gmra.mrb[0].mxu0 %v541
    %v609 = vpop.f32.mrb[0].mxu0
    %v610 = vadd.f32 0.0, %v609
    %v611 = vpop.f32.mrb[0].mxu0
    %612 = vdwg.mxu0
    %v613 = vld [vmem:[#allocation4 + $0x178] sm:$0xff]
    %v614 = vld [vmem:[#allocation4 + $0x180] sm:$0xff]
    %v615 = vld [vmem:[#allocation4 + $0x188] sm:$0xff]
    %v616 = vld [vmem:[#allocation4 + $0x190] sm:$0xff]
    %v617 = vld [vmem:[#allocation4 + $0x198] sm:$0xff]
    %v618 = vld [vmem:[#allocation4 + $0x1a0] sm:$0xff]
    %v619 = vld [vmem:[#allocation4 + $0x1a8] sm:$0xff]
    %v620 = vld [vmem:[#allocation4 + $0x1b0] sm:$0xff]
    %v621 = vld [vmem:[#allocation4 + $0x1b8] sm:$0xff]
    %v622 = vld [vmem:[#allocation4 + $0x1c0] sm:$0xff]
    %v623 = vld [vmem:[#allocation4 + $0x1c8] sm:$0xff]
    %v624 = vld [vmem:[#allocation4 + $0x1d0] sm:$0xff]
    %v625 = vld [vmem:[#allocation4 + $0x1d8] sm:$0xff]
    %v626 = vld [vmem:[#allocation4 + $0x1e0] sm:$0xff]
    %v627 = vld [vmem:[#allocation4 + $0x1e8] sm:$0xff]
    %v628 = vld [vmem:[#allocation4 + $0x1f0] sm:$0xff]
    %v629 = vld [vmem:[#allocation4 + $0x1f8] sm:$0x1]
    %v630 = vlaneseq
    %v631 = vshrl.u32 %v630, 7
    %v632 = vsub.s32 0, %v631
    %v633 = vrot.slane %v629, %v632
    %634 = vmatprep.subr.mxu0 0.0
    %635 = vmatpush1.msra.mxu0 %v613
    %636 = vmatprep.subr.mxu0 0.0
    %637 = vmatpush1.msra.mxu0 %v614
    %638 = vmatprep.subr.mxu0 0.0
    %639 = vmatpush1.msra.mxu0 %v615
    %640 = vmatprep.subr.mxu0 0.0
    %641 = vmatpush1.msra.mxu0 %v616
    %642 = vmatprep.subr.mxu0 0.0
    %643 = vmatpush1.msra.mxu0 %v617
    %644 = vmatprep.subr.mxu0 0.0
    %645 = vmatpush1.msra.mxu0 %v618
    %646 = vmatprep.subr.mxu0 0.0
    %647 = vmatpush1.msra.mxu0 %v619
    %648 = vmatprep.subr.mxu0 0.0
    %649 = vmatpush1.msra.mxu0 %v620
    %650 = vmatprep.subr.mxu0 0.0
    %651 = vmatpush1.msra.mxu0 %v621
    %652 = vmatprep.subr.mxu0 0.0
    %653 = vmatpush1.msra.mxu0 %v622
    %654 = vmatprep.subr.mxu0 0.0
    %655 = vmatpush1.msra.mxu0 %v623
    %656 = vmatprep.subr.mxu0 0.0
    %657 = vmatpush1.msra.mxu0 %v624
    %658 = vmatprep.subr.mxu0 0.0
    %659 = vmatpush1.msra.mxu0 %v625
    %660 = vmatprep.subr.mxu0 0.0
    %661 = vmatpush1.msra.mxu0 %v626
    %662 = vmatprep.subr.mxu0 0.0
    %663 = vmatpush1.msra.mxu0 %v627
    %664 = vmatprep.subr.mxu0 0.0
    %665 = vmatpush1.msra.mxu0 %v628
    %666 = vmatprep.subr.mxu0 0.0
    %667 = vmatpush1.msra.mxu0 0.0
    %668 = vmatprep.subr.mxu0 0.0
    %669 = vmatpush1.msra.mxu0 0.0
    %670 = vmatprep.subr.mxu0 0.0
    %671 = vmatpush1.msra.mxu0 0.0
    %672 = vmatprep.subr.mxu0 0.0
    %673 = vmatpush1.msra.mxu0 0.0
    %674 = vmatprep.subr.mxu0 0.0
    %675 = vmatpush1.msra.mxu0 0.0
    %676 = vmatprep.subr.mxu0 0.0
    %677 = vmatpush1.msra.mxu0 0.0
    %678 = vmatprep.subr.mxu0 0.0
    %679 = vmatpush1.msra.mxu0 0.0
    %680 = vmatprep.subr.mxu0 0.0
    %681 = vmatpush1.msra.mxu0 0.0
    %682 = vmatprep.subr.mxu0 0.0
    %683 = vmatpush1.msra.mxu0 0.0
    %684 = vmatprep.subr.mxu0 0.0
    %685 = vmatpush1.msra.mxu0 0.0
    %686 = vmatprep.subr.mxu0 0.0
    %687 = vmatpush1.msra.mxu0 0.0
    %688 = vmatprep.subr.mxu0 0.0
    %689 = vmatpush1.msra.mxu0 0.0
    %690 = vmatprep.subr.mxu0 0.0
    %691 = vmatpush1.msra.mxu0 0.0
    %692 = vmatprep.subr.mxu0 0.0
    %693 = vmatpush1.msra.mxu0 0.0
    %694 = vmatprep.subr.mxu0 0.0
    %695 = vmatpush1.msra.mxu0 0.0
    %696 = vmatprep.subr.mxu0 0.0
    %697 = vmatpush1.msra.mxu0 0.0
    %698 = vmatprep.mubr.f32.mxu0 0.0
    %699 = vmatmul.mubr.f32.gmra.mrb[0].mxu0 %v610
    %v700 = vpop.f32.mrb[0].mxu0
    %v701 = vadd.f32 %v633, %v700
    %v702 = vpop.f32.mrb[0].mxu0
    %703 = vdwg.mxu0
    %v704 = vmax.f32 %v701, 0.0
    %v705 = vld [vmem:[#allocation4 + $0x200] sm:$0xff]
    %v706 = vld [vmem:[#allocation4 + $0x208] sm:$0xff]
    %v707 = vld [vmem:[#allocation4 + $0x210] sm:$0xff]
    %v708 = vld [vmem:[#allocation4 + $0x218] sm:$0xff]
    %v709 = vld [vmem:[#allocation4 + $0x220] sm:$0xff]
    %v710 = vld [vmem:[#allocation4 + $0x228] sm:$0xff]
    %v711 = vld [vmem:[#allocation4 + $0x230] sm:$0xff]
    %v712 = vld [vmem:[#allocation4 + $0x238] sm:$0xff]
    %v713 = vld [vmem:[#allocation4 + $0x240] sm:$0xff]
    %v714 = vld [vmem:[#allocation4 + $0x248] sm:$0xff]
    %v715 = vld [vmem:[#allocation4 + $0x250] sm:$0xff]
    %v716 = vld [vmem:[#allocation4 + $0x258] sm:$0xff]
    %v717 = vld [vmem:[#allocation4 + $0x260] sm:$0xff]
    %v718 = vld [vmem:[#allocation4 + $0x268] sm:$0xff]
    %v719 = vld [vmem:[#allocation4 + $0x270] sm:$0xff]
    %v720 = vld [vmem:[#allocation4 + $0x278] sm:$0xff]
    %v721 = vld [vmem:[#allocation4 + $0x280] sm:$0x1]
    %v722 = vlaneseq
    %v723 = vshrl.u32 %v722, 7
    %v724 = vsub.s32 0, %v723
    %v725 = vrot.slane %v721, %v724
    %726 = vmatprep.subr.mxu0 0.0
    %727 = vmatpush1.msra.mxu0 %v705
    %728 = vmatprep.subr.mxu0 0.0
    %729 = vmatpush1.msra.mxu0 %v706
    %730 = vmatprep.subr.mxu0 0.0
    %731 = vmatpush1.msra.mxu0 %v707
    %732 = vmatprep.subr.mxu0 0.0
    %733 = vmatpush1.msra.mxu0 %v708
    %734 = vmatprep.subr.mxu0 0.0
    %735 = vmatpush1.msra.mxu0 %v709
    %736 = vmatprep.subr.mxu0 0.0
    %737 = vmatpush1.msra.mxu0 %v710
    %738 = vmatprep.subr.mxu0 0.0
    %739 = vmatpush1.msra.mxu0 %v711
    %740 = vmatprep.subr.mxu0 0.0
    %741 = vmatpush1.msra.mxu0 %v712
    %742 = vmatprep.subr.mxu0 0.0
    %743 = vmatpush1.msra.mxu0 %v713
    %744 = vmatprep.subr.mxu0 0.0
    %745 = vmatpush1.msra.mxu0 %v714
    %746 = vmatprep.subr.mxu0 0.0
    %747 = vmatpush1.msra.mxu0 %v715
    %748 = vmatprep.subr.mxu0 0.0
    %749 = vmatpush1.msra.mxu0 %v716
    %750 = vmatprep.subr.mxu0 0.0
    %751 = vmatpush1.msra.mxu0 %v717
    %752 = vmatprep.subr.mxu0 0.0
    %753 = vmatpush1.msra.mxu0 %v718
    %754 = vmatprep.subr.mxu0 0.0
    %755 = vmatpush1.msra.mxu0 %v719
    %756 = vmatprep.subr.mxu0 0.0
    %757 = vmatpush1.msra.mxu0 %v720
    %758 = vmatprep.subr.mxu0 0.0
    %759 = vmatpush1.msra.mxu0 0.0
    %760 = vmatprep.subr.mxu0 0.0
    %761 = vmatpush1.msra.mxu0 0.0
    %762 = vmatprep.subr.mxu0 0.0
    %763 = vmatpush1.msra.mxu0 0.0
    %764 = vmatprep.subr.mxu0 0.0
    %765 = vmatpush1.msra.mxu0 0.0
    %766 = vmatprep.subr.mxu0 0.0
    %767 = vmatpush1.msra.mxu0 0.0
    %768 = vmatprep.subr.mxu0 0.0
    %769 = vmatpush1.msra.mxu0 0.0
    %770 = vmatprep.subr.mxu0 0.0
    %771 = vmatpush1.msra.mxu0 0.0
    %772 = vmatprep.subr.mxu0 0.0
    %773 = vmatpush1.msra.mxu0 0.0
    %774 = vmatprep.subr.mxu0 0.0
    %775 = vmatpush1.msra.mxu0 0.0
    %776 = vmatprep.subr.mxu0 0.0
    %777 = vmatpush1.msra.mxu0 0.0
    %778 = vmatprep.subr.mxu0 0.0
    %779 = vmatpush1.msra.mxu0 0.0
    %780 = vmatprep.subr.mxu0 0.0
    %781 = vmatpush1.msra.mxu0 0.0
    %782 = vmatprep.subr.mxu0 0.0
    %783 = vmatpush1.msra.mxu0 0.0
    %784 = vmatprep.subr.mxu0 0.0
    %785 = vmatpush1.msra.mxu0 0.0
    %786 = vmatprep.subr.mxu0 0.0
    %787 = vmatpush1.msra.mxu0 0.0
    %788 = vmatprep.subr.mxu0 0.0
    %789 = vmatpush1.msra.mxu0 0.0
    %790 = vmatprep.mubr.f32.mxu0 0.0
    %791 = vmatmul.mubr.f32.gmra.mrb[0].mxu0 %v704
    %v792 = vpop.f32.mrb[0].mxu0
    %v793 = vadd.f32 %v725, %v792
    %v794 = vpop.f32.mrb[0].mxu0
    %795 = vdwg.mxu0
    %v796 = vadd.f32 %v537, %v793
    %v797 = vld [vmem:[#allocation4 + $0x288] sm:$0x1]
    %v798 = vld [vmem:[#allocation4 + $0x290] sm:$0x1]
    %799 = vadd.xlane.f32.xlu0 %v796
    %v800 = vpop.xlane.xlu0 %799
    %v801 = vmul.f32 %v800, 0.03125
    %v802 = vmul.f32 %v796, %v796
    %803 = vadd.xlane.f32.xlu0 %v802
    %v804 = vpop.xlane.xlu0 %803
    %v805 = vmul.f32 %v804, 0.03125
    %v806 = vmul.f32 %v801, %v801
    %v807 = vsub.f32 %v805, %v806
    %v808 = vsub.f32 %v796, %v801
    %v809 = vadd.f32 %v807, 1e-05
    %v810 = vrsqrt.pop %v809
    %v811 = vmul.f32 %v808, %v810
    %v812 = vlaneseq
    %v813 = vshrl.u32 %v812, 7
    %v814 = vsub.s32 0, %v813
    %v815 = vrot.slane %v797, %v814
    %v816 = vmul.f32 %v811, %v815
    %v817 = vlaneseq
    %v818 = vshrl.u32 %v817, 7
    %v819 = vsub.s32 0, %v818
    %v820 = vrot.slane %v798, %v819
    %v821 = vadd.f32 %v816, %v820
    %822 = vmatprep.subr.mxu0 0.0
    %823 = vmatpush1.msra.mxu0 %v821
    %824 = vmatprep.subr.mxu0 0.0
    %825 = vmatpush1.msra.mxu0 0.0
    %826 = vmatprep.subr.mxu0 0.0
    %827 = vmatpush1.msra.mxu0 0.0
    %828 = vmatprep.subr.mxu0 0.0
    %829 = vmatpush1.msra.mxu0 0.0
    %830 = vmatprep.subr.mxu0 0.0
    %831 = vmatpush1.msra.mxu0 0.0
    %832 = vmatprep.subr.mxu0 0.0
    %833 = vmatpush1.msra.mxu0 0.0
    %834 = vmatprep.subr.mxu0 0.0
    %835 = vmatpush1.msra.mxu0 0.0
    %836 = vmatprep.subr.mxu0 0.0
    %837 = vmatpush1.msra.mxu0 0.0
    %838 = vmatprep.subr.mxu0 0.0
    %839 = vmatpush1.msra.mxu0 0.0
    %840 = vmatprep.subr.mxu0 0.0
    %841 = vmatpush1.msra.mxu0 0.0
    %842 = vmatprep.subr.mxu0 0.0
    %843 = vmatpush1.msra.mxu0 0.0
    %844 = vmatprep.subr.mxu0 0.0
    %845 = vmatpush1.msra.mxu0 0.0
    %846 = vmatprep.subr.mxu0 0.0
    %847 = vmatpush1.msra.mxu0 0.0
    %848 = vmatprep.subr.mxu0 0.0
    %849 = vmatpush1.msra.mxu0 0.0
    %850 = vmatprep.subr.mxu0 0.0
    %851 = vmatpush1.msra.mxu0 0.0
    %852 = vmatprep.subr.mxu0 0.0
    %853 = vmatpush1.msra.mxu0 0.0
    %854 = vmatprep.subr.mxu0 0.0
    %855 = vmatpush1.msra.mxu0 0.0
    %856 = vmatprep.subr.mxu0 0.0
    %857 = vmatpush1.msra.mxu0 0.0
    %858 = vmatprep.subr.mxu0 0.0
    %859 = vmatpush1.msra.mxu0 0.0
    %860 = vmatprep.subr.mxu0 0.0
    %861 = vmatpush1.msra.mxu0 0.0
    %862 = vmatprep.subr.mxu0 0.0
    %863 = vmatpush1.msra.mxu0 0.0
    %864 = vmatprep.subr.mxu0 0.0
    %865 = vmatpush1.msra.mxu0 0.0
    %866 = vmatprep.subr.mxu0 0.0
    %867 = vmatpush1.msra.mxu0 0.0
    %868 = vmatprep.subr.mxu0 0.0
    %869 = vmatpush1.msra.mxu0 0.0
    %870 = vmatprep.subr.mxu0 0.0
    %871 = vmatpush1.msra.mxu0 0.0
    %872 = vmatprep.subr.mxu0 0.0
    %873 = vmatpush1.msra.mxu0 0.0
    %874 = vmatprep.subr.mxu0 0.0
    %875 = vmatpush1.msra.mxu0 0.0
    %876 = vmatprep.subr.mxu0 0.0
    %877 = vmatpush1.msra.mxu0 0.0
    %878 = vmatprep.subr.mxu0 0.0
    %879 = vmatpush1.msra.mxu0 0.0
    %880 = vmatprep.subr.mxu0 0.0
    %881 = vmatpush1.msra.mxu0 0.0
    %882 = vmatprep.subr.mxu0 0.0
    %883 = vmatpush1.msra.mxu0 0.0
    %884 = vmatprep.subr.mxu0 0.0
    %885 = vmatpush1.msra.mxu0 0.0
    %886 = vmatprep.mubr.f32.mxu0 0.0
    %887 = vmatmul.mubr.f32.gmra.mrb[0].mxu0 %v541
    %v888 = vpop.f32.mrb[0].mxu0
    %v889 = vadd.f32 0.0, %v888
    %v890 = vpop.f32.mrb[0].mxu0
    %891 = vdwg.mxu0
    %v892 = vld [vmem:[#allocation4 + $0x298] sm:$0xff]
    %v893 = vld [vmem:[#allocation4 + $0x2a0] sm:$0xff]
    %v894 = vld [vmem:[#allocation4 + $0x2a8] sm:$0xff]
    %v895 = vld [vmem:[#allocation4 + $0x2b0] sm:$0xff]
    %v896 = vld [vmem:[#allocation4 + $0x2b8] sm:$0xff]
    %v897 = vld [vmem:[#allocation4 + $0x2c0] sm:$0xff]
    %v898 = vld [vmem:[#allocation4 + $0x2c8] sm:$0xff]
    %v899 = vld [vmem:[#allocation4 + $0x2d0] sm:$0xff]
    %v900 = vld [vmem:[#allocation4 + $0x2d8] sm:$0xff]
    %v901 = vld [vmem:[#allocation4 + $0x2e0] sm:$0xff]
    %v902 = vld [vmem:[#allocation4 + $0x2e8] sm:$0xff]
    %v903 = vld [vmem:[#allocation4 + $0x2f0] sm:$0xff]
    %v904 = vld [vmem:[#allocation4 + $0x2f8] sm:$0xff]
    %v905 = vld [vmem:[#allocation4 + $0x300] sm:$0xff]
    %v906 = vld [vmem:[#allocation4 + $0x308] sm:$0xff]
    %v907 = vld [vmem:[#allocation4 + $0x310] sm:$0xff]
    %v908 = vld [vmem:[#allocation4 + $0x318] sm:$0x1]
    %v909 = vlaneseq
    %v910 = vshrl.u32 %v909, 7
    %v911 = vsub.s32 0, %v910
    %v912 = vrot.slane %v908, %v911
    %913 = vmatprep.subr.mxu0 0.0
    %914 = vmatpush1.msra.mxu0 %v892
    %915 = vmatprep.subr.mxu0 0.0
    %916 = vmatpush1.msra.mxu0 %v893
    %917 = vmatprep.subr.mxu0 0.0
    %918 = vmatpush1.msra.mxu0 %v894
    %919 = vmatprep.subr.mxu0 0.0
    %920 = vmatpush1.msra.mxu0 %v895
    %921 = vmatprep.subr.mxu0 0.0
    %922 = vmatpush1.msra.mxu0 %v896
    %923 = vmatprep.subr.mxu0 0.0
    %924 = vmatpush1.msra.mxu0 %v897
    %925 = vmatprep.subr.mxu0 0.0
    %926 = vmatpush1.msra.mxu0 %v898
    %927 = vmatprep.subr.mxu0 0.0
    %928 = vmatpush1.msra.mxu0 %v899
    %929 = vmatprep.subr.mxu0 0.0
    %930 = vmatpush1.msra.mxu0 %v900
    %931 = vmatprep.subr.mxu0 0.0
    %932 = vmatpush1.msra.mxu0 %v901
    %933 = vmatprep.subr.mxu0 0.0
    %934 = vmatpush1.msra.mxu0 %v902
    %935 = vmatprep.subr.mxu0 0.0
    %936 = vmatpush1.msra.mxu0 %v903
    %937 = vmatprep.subr.mxu0 0.0
    %938 = vmatpush1.msra.mxu0 %v904
    %939 = vmatprep.subr.mxu0 0.0
    %940 = vmatpush1.msra.mxu0 %v905
    %941 = vmatprep.subr.mxu0 0.0
    %942 = vmatpush1.msra.mxu0 %v906
    %943 = vmatprep.subr.mxu0 0.0
    %944 = vmatpush1.msra.mxu0 %v907
    %945 = vmatprep.subr.mxu0 0.0
    %946 = vmatpush1.msra.mxu0 0.0
    %947 = vmatprep.subr.mxu0 0.0
    %948 = vmatpush1.msra.mxu0 0.0
    %949 = vmatprep.subr.mxu0 0.0
    %950 = vmatpush1.msra.mxu0 0.0
    %951 = vmatprep.subr.mxu0 0.0
    %952 = vmatpush1.msra.mxu0 0.0
    %953 = vmatprep.subr.mxu0 0.0
    %954 = vmatpush1.msra.mxu0 0.0
    %955 = vmatprep.subr.mxu0 0.0
    %956 = vmatpush1.msra.mxu0 0.0
    %957 = vmatprep.subr.mxu0 0.0
    %958 = vmatpush1.msra.mxu0 0.0
    %959 = vmatprep.subr.mxu0 0.0
    %960 = vmatpush1.msra.mxu0 0.0
    %961 = vmatprep.subr.mxu0 0.0
    %962 = vmatpush1.msra.mxu0 0.0
    %963 = vmatprep.subr.mxu0 0.0
    %964 = vmatpush1.msra.mxu0 0.0
    %965 = vmatprep.subr.mxu0 0.0
    %966 = vmatpush1.msra.mxu0 0.0
    %967 = vmatprep.subr.mxu0 0.0
    %968 = vmatpush1.msra.mxu0 0.0
    %969 = vmatprep.subr.mxu0 0.0
    %970 = vmatpush1.msra.mxu0 0.0
    %971 = vmatprep.subr.mxu0 0.0
    %972 = vmatpush1.msra.mxu0 0.0
    %973 = vmatprep.subr.mxu0 0.0
    %974 = vmatpush1.msra.mxu0 0.0
    %975 = vmatprep.subr.mxu0 0.0
    %976 = vmatpush1.msra.mxu0 0.0
    %977 = vmatprep.mubr.f32.mxu0 0.0
    %978 = vmatmul.mubr.f32.gmra.mrb[0].mxu0 %v889
    %v979 = vpop.f32.mrb[0].mxu0
    %v980 = vadd.f32 %v912, %v979
    %v981 = vpop.f32.mrb[0].mxu0
    %982 = vdwg.mxu0
    %v983 = vmax.f32 %v980, 0.0
    %v984 = vld [vmem:[#allocation4 + $0x320] sm:$0xff]
    %v985 = vld [vmem:[#allocation4 + $0x328] sm:$0xff]
    %v986 = vld [vmem:[#allocation4 + $0x330] sm:$0xff]
    %v987 = vld [vmem:[#allocation4 + $0x338] sm:$0xff]
    %v988 = vld [vmem:[#allocation4 + $0x340] sm:$0xff]
    %v989 = vld [vmem:[#allocation4 + $0x348] sm:$0xff]
    %v990 = vld [vmem:[#allocation4 + $0x350] sm:$0xff]
    %v991 = vld [vmem:[#allocation4 + $0x358] sm:$0xff]
    %v992 = vld [vmem:[#allocation4 + $0x360] sm:$0xff]
    %v993 = vld [vmem:[#allocation4 + $0x368] sm:$0xff]
    %v994 = vld [vmem:[#allocation4 + $0x370] sm:$0xff]
    %v995 = vld [vmem:[#allocation4 + $0x378] sm:$0xff]
    %v996 = vld [vmem:[#allocation4 + $0x380] sm:$0xff]
    %v997 = vld [vmem:[#allocation4 + $0x388] sm:$0xff]
    %v998 = vld [vmem:[#allocation4 + $0x390] sm:$0xff]
    %v999 = vld [vmem:[#allocation4 + $0x398] sm:$0xff]
    %v1000 = vld [vmem:[#allocation4 + $0x3a0] sm:$0x1]
    %v1001 = vlaneseq
    %v1002 = vshrl.u32 %v1001, 7
    %v1003 = vsub.s32 0, %v1002
    %v1004 = vrot.slane %v1000, %v1003
    %1005 = vmatprep.subr.mxu0 0.0
    %1006 = vmatpush1.msra.mxu0 %v984
    %1007 = vmatprep.subr.mxu0 0.0
    %1008 = vmatpush1.msra.mxu0 %v985
    %1009 = vmatprep.subr.mxu0 0.0
    %1010 = vmatpush1.msra.mxu0 %v986
    %1011 = vmatprep.subr.mxu0 0.0
    %1012 = vmatpush1.msra.mxu0 %v987
    %1013 = vmatprep.subr.mxu0 0.0
    %1014 = vmatpush1.msra.mxu0 %v988
    %1015 = vmatprep.subr.mxu0 0.0
    %1016 = vmatpush1.msra.mxu0 %v989
    %1017 = vmatprep.subr.mxu0 0.0
    %1018 = vmatpush1.msra.mxu0 %v990
    %1019 = vmatprep.subr.mxu0 0.0
    %1020 = vmatpush1.msra.mxu0 %v991
    %1021 = vmatprep.subr.mxu0 0.0
    %1022 = vmatpush1.msra.mxu0 %v992
    %1023 = vmatprep.subr.mxu0 0.0
    %1024 = vmatpush1.msra.mxu0 %v993
    %1025 = vmatprep.subr.mxu0 0.0
    %1026 = vmatpush1.msra.mxu0 %v994
    %1027 = vmatprep.subr.mxu0 0.0
    %1028 = vmatpush1.msra.mxu0 %v995
    %1029 = vmatprep.subr.mxu0 0.0
    %1030 = vmatpush1.msra.mxu0 %v996
    %1031 = vmatprep.subr.mxu0 0.0
    %1032 = vmatpush1.msra.mxu0 %v997
    %1033 = vmatprep.subr.mxu0 0.0
    %1034 = vmatpush1.msra.mxu0 %v998
    %1035 = vmatprep.subr.mxu0 0.0
    %1036 = vmatpush1.msra.mxu0 %v999
    %1037 = vmatprep.subr.mxu0 0.0
    %1038 = vmatpush1.msra.mxu0 0.0
    %1039 = vmatprep.subr.mxu0 0.0
    %1040 = vmatpush1.msra.mxu0 0.0
    %1041 = vmatprep.subr.mxu0 0.0
    %1042 = vmatpush1.msra.mxu0 0.0
    %1043 = vmatprep.subr.mxu0 0.0
    %1044 = vmatpush1.msra.mxu0 0.0
    %1045 = vmatprep.subr.mxu0 0.0
    %1046 = vmatpush1.msra.mxu0 0.0
    %1047 = vmatprep.subr.mxu0 0.0
    %1048 = vmatpush1.msra.mxu0 0.0
    %1049 = vmatprep.subr.mxu0 0.0
    %1050 = vmatpush1.msra.mxu0 0.0
    %1051 = vmatprep.subr.mxu0 0.0
    %1052 = vmatpush1.msra.mxu0 0.0
    %1053 = vmatprep.subr.mxu0 0.0
    %1054 = vmatpush1.msra.mxu0 0.0
    %1055 = vmatprep.subr.mxu0 0.0
    %1056 = vmatpush1.msra.mxu0 0.0
    %1057 = vmatprep.subr.mxu0 0.0
    %1058 = vmatpush1.msra.mxu0 0.0
    %1059 = vmatprep.subr.mxu0 0.0
    %1060 = vmatpush1.msra.mxu0 0.0
    %1061 = vmatprep.subr.mxu0 0.0
    %1062 = vmatpush1.msra.mxu0 0.0
    %1063 = vmatprep.subr.mxu0 0.0
    %1064 = vmatpush1.msra.mxu0 0.0
    %1065 = vmatprep.subr.mxu0 0.0
    %1066 = vmatpush1.msra.mxu0 0.0
    %1067 = vmatprep.subr.mxu0 0.0
    %1068 = vmatpush1.msra.mxu0 0.0
    %1069 = vmatprep.mubr.f32.mxu0 0.0
    %1070 = vmatmul.mubr.f32.gmra.mrb[0].mxu0 %v983
    %v1071 = vpop.f32.mrb[0].mxu0
    %v1072 = vadd.f32 %v1004, %v1071
    %v1073 = vpop.f32.mrb[0].mxu0
    %1074 = vdwg.mxu0
    %v1075 = vadd.f32 %v821, %v1072
    %v1076 = vld [vmem:[#allocation4 + $0x3a8] sm:$0x1]
    %v1077 = vld [vmem:[#allocation4 + $0x3b0] sm:$0x1]
    %1078 = vadd.xlane.f32.xlu0 %v1075
    %v1079 = vpop.xlane.xlu0 %1078
    %v1080 = vmul.f32 %v1079, 0.03125
    %v1081 = vmul.f32 %v1075, %v1075
    %1082 = vadd.xlane.f32.xlu0 %v1081
    %v1083 = vpop.xlane.xlu0 %1082
    %v1084 = vmul.f32 %v1083, 0.03125
    %v1085 = vmul.f32 %v1080, %v1080
    %v1086 = vsub.f32 %v1084, %v1085
    %v1087 = vsub.f32 %v1075, %v1080
    %v1088 = vadd.f32 %v1086, 1e-05
    %v1089 = vrsqrt.pop %v1088
    %v1090 = vmul.f32 %v1087, %v1089
    %v1091 = vlaneseq
    %v1092 = vshrl.u32 %v1091, 7
    %v1093 = vsub.s32 0, %v1092
    %v1094 = vrot.slane %v1076, %v1093
    %v1095 = vmul.f32 %v1090, %v1094
    %v1096 = vlaneseq
    %v1097 = vshrl.u32 %v1096, 7
    %v1098 = vsub.s32 0, %v1097
    %v1099 = vrot.slane %v1077, %v1098
    %v1100 = vadd.f32 %v1095, %v1099
    %v1101 = vld [vmem:[#allocation4 + $0x5e8] sm:$0xff]
    %v1102 = vld [vmem:[#allocation4 + $0x5f0] sm:$0xff]
    %v1104 = vsel %vm539, %v1101, 0
    %v1107 = vsel %vm539, %v1102, 0
    %1109 = vmatprep.subr.mxu0 0.0
    %1110 = vmatpush1.msra.mxu0 %v1100
    %1111 = vmatprep.subr.mxu0 0.0
    %1112 = vmatpush1.msra.mxu0 0.0
    %1113 = vmatprep.subr.mxu0 0.0
    %1114 = vmatpush1.msra.mxu0 0.0
    %1115 = vmatprep.subr.mxu0 0.0
    %1116 = vmatpush1.msra.mxu0 0.0
    %1117 = vmatprep.subr.mxu0 0.0
    %1118 = vmatpush1.msra.mxu0 0.0
    %1119 = vmatprep.subr.mxu0 0.0
    %1120 = vmatpush1.msra.mxu0 0.0
    %1121 = vmatprep.subr.mxu0 0.0
    %1122 = vmatpush1.msra.mxu0 0.0
    %1123 = vmatprep.subr.mxu0 0.0
    %1124 = vmatpush1.msra.mxu0 0.0
    %1125 = vmatprep.subr.mxu0 0.0
    %1126 = vmatpush1.msra.mxu0 0.0
    %1127 = vmatprep.subr.mxu0 0.0
    %1128 = vmatpush1.msra.mxu0 0.0
    %1129 = vmatprep.subr.mxu0 0.0
    %1130 = vmatpush1.msra.mxu0 0.0
    %1131 = vmatprep.subr.mxu0 0.0
    %1132 = vmatpush1.msra.mxu0 0.0
    %1133 = vmatprep.subr.mxu0 0.0
    %1134 = vmatpush1.msra.mxu0 0.0
    %1135 = vmatprep.subr.mxu0 0.0
    %1136 = vmatpush1.msra.mxu0 0.0
    %1137 = vmatprep.subr.mxu0 0.0
    %1138 = vmatpush1.msra.mxu0 0.0
    %1139 = vmatprep.subr.mxu0 0.0
    %1140 = vmatpush1.msra.mxu0 0.0
    %1141 = vmatprep.subr.mxu0 0.0
    %1142 = vmatpush1.msra.mxu0 0.0
    %1143 = vmatprep.subr.mxu0 0.0
    %1144 = vmatpush1.msra.mxu0 0.0
    %1145 = vmatprep.subr.mxu0 0.0
    %1146 = vmatpush1.msra.mxu0 0.0
    %1147 = vmatprep.subr.mxu0 0.0
    %1148 = vmatpush1.msra.mxu0 0.0
    %1149 = vmatprep.subr.mxu0 0.0
    %1150 = vmatpush1.msra.mxu0 0.0
    %1151 = vmatprep.subr.mxu0 0.0
    %1152 = vmatpush1.msra.mxu0 0.0
    %1153 = vmatprep.subr.mxu0 0.0
    %1154 = vmatpush1.msra.mxu0 0.0
    %1155 = vmatprep.subr.mxu0 0.0
    %1156 = vmatpush1.msra.mxu0 0.0
    %1157 = vmatprep.subr.mxu0 0.0
    %1158 = vmatpush1.msra.mxu0 0.0
    %1159 = vmatprep.subr.mxu0 0.0
    %1160 = vmatpush1.msra.mxu0 0.0
    %1161 = vmatprep.subr.mxu0 0.0
    %1162 = vmatpush1.msra.mxu0 0.0
    %1163 = vmatprep.subr.mxu0 0.0
    %1164 = vmatpush1.msra.mxu0 0.0
    %1165 = vmatprep.subr.mxu0 0.0
    %1166 = vmatpush1.msra.mxu0 0.0
    %1167 = vmatprep.subr.mxu0 0.0
    %1168 = vmatpush1.msra.mxu0 0.0
    %1169 = vmatprep.subr.mxu0 0.0
    %1170 = vmatpush1.msra.mxu0 0.0
    %1171 = vmatprep.subr.mxu0 0.0
    %1172 = vmatpush1.msra.mxu0 0.0
    %1173 = vmatprep.mubr.f32.mxu0 0.0
    %1174 = vmatmul.mubr.f32.gmra.mrb[0].mxu0 %v1104
    %v1175 = vpop.f32.mrb[0].mxu0
    %v1176 = vadd.f32 0.0, %v1175
    %v1177 = vpop.f32.mrb[0].mxu0
    %1178 = vmatprep.mubr.f32.mxu0 0.0
    %1179 = vmatmul.mubr.f32.gmra.mrb[0].mxu0 %v1107
    %v1180 = vpop.f32.mrb[0].mxu0
    %v1181 = vadd.f32 0.0, %v1180
    %v1182 = vpop.f32.mrb[0].mxu0
    %1183 = vdwg.mxu0
    %v1184 = vadd.f32 %v459, %v1176
    %v1185 = vadd.f32 %v460, %v1181
    %v1186 = vld [vmem:[#allocation4 + $0x3b8] sm:$0xff]
    %v1187 = vld [vmem:[#allocation4 + $0x3c0] sm:$0xff]
    %v1188 = vld [vmem:[#allocation4 + $0x3c8] sm:$0xff]
    %v1189 = vld [vmem:[#allocation4 + $0x3d0] sm:$0xff]
    %v1190 = vld [vmem:[#allocation4 + $0x3d8] sm:$0xff]
    %v1191 = vld [vmem:[#allocation4 + $0x3e0] sm:$0xff]
    %v1192 = vld [vmem:[#allocation4 + $0x3e8] sm:$0xff]
    %v1193 = vld [vmem:[#allocation4 + $0x3f0] sm:$0xff]
    %v1194 = vld [vmem:[#allocation4 + $0x3f8] sm:$0xff]
    %v1195 = vld [vmem:[#allocation4 + $0x400] sm:$0xff]
    %v1196 = vld [vmem:[#allocation4 + $0x408] sm:$0xff]
    %v1197 = vld [vmem:[#allocation4 + $0x410] sm:$0xff]
    %v1198 = vld [vmem:[#allocation4 + $0x418] sm:$0xff]
    %v1199 = vld [vmem:[#allocation4 + $0x420] sm:$0xff]
    %v1200 = vld [vmem:[#allocation4 + $0x428] sm:$0xff]
    %v1201 = vld [vmem:[#allocation4 + $0x430] sm:$0xff]
    %v1202 = vld [vmem:[#allocation4 + $0x438] sm:$0x1]
    %v1203 = vlaneseq
    %v1204 = vshrl.u32 %v1203, 7
    %v1205 = vsub.s32 0, %v1204
    %v1206 = vrot.slane %v1202, %v1205
    %1207 = vmatprep.subr.mxu0 0.0
    %1208 = vmatpush1.msra.mxu0 %v1186
    %1209 = vmatprep.subr.mxu0 0.0
    %1210 = vmatpush1.msra.mxu0 %v1187
    %1211 = vmatprep.subr.mxu0 0.0
    %1212 = vmatpush1.msra.mxu0 %v1188
    %1213 = vmatprep.subr.mxu0 0.0
    %1214 = vmatpush1.msra.mxu0 %v1189
    %1215 = vmatprep.subr.mxu0 0.0
    %1216 = vmatpush1.msra.mxu0 %v1190
    %1217 = vmatprep.subr.mxu0 0.0
    %1218 = vmatpush1.msra.mxu0 %v1191
    %1219 = vmatprep.subr.mxu0 0.0
    %1220 = vmatpush1.msra.mxu0 %v1192
    %1221 = vmatprep.subr.mxu0 0.0
    %1222 = vmatpush1.msra.mxu0 %v1193
    %1223 = vmatprep.subr.mxu0 0.0
    %1224 = vmatpush1.msra.mxu0 %v1194
    %1225 = vmatprep.subr.mxu0 0.0
    %1226 = vmatpush1.msra.mxu0 %v1195
    %1227 = vmatprep.subr.mxu0 0.0
    %1228 = vmatpush1.msra.mxu0 %v1196
    %1229 = vmatprep.subr.mxu0 0.0
    %1230 = vmatpush1.msra.mxu0 %v1197
    %1231 = vmatprep.subr.mxu0 0.0
    %1232 = vmatpush1.msra.mxu0 %v1198
    %1233 = vmatprep.subr.mxu0 0.0
    %1234 = vmatpush1.msra.mxu0 %v1199
    %1235 = vmatprep.subr.mxu0 0.0
    %1236 = vmatpush1.msra.mxu0 %v1200
    %1237 = vmatprep.subr.mxu0 0.0
    %1238 = vmatpush1.msra.mxu0 %v1201
    %1239 = vmatprep.subr.mxu0 0.0
    %1240 = vmatpush1.msra.mxu0 0.0
    %1241 = vmatprep.subr.mxu0 0.0
    %1242 = vmatpush1.msra.mxu0 0.0
    %1243 = vmatprep.subr.mxu0 0.0
    %1244 = vmatpush1.msra.mxu0 0.0
    %1245 = vmatprep.subr.mxu0 0.0
    %1246 = vmatpush1.msra.mxu0 0.0
    %1247 = vmatprep.subr.mxu0 0.0
    %1248 = vmatpush1.msra.mxu0 0.0
    %1249 = vmatprep.subr.mxu0 0.0
    %1250 = vmatpush1.msra.mxu0 0.0
    %1251 = vmatprep.subr.mxu0 0.0
    %1252 = vmatpush1.msra.mxu0 0.0
    %1253 = vmatprep.subr.mxu0 0.0
    %1254 = vmatpush1.msra.mxu0 0.0
    %1255 = vmatprep.subr.mxu0 0.0
    %1256 = vmatpush1.msra.mxu0 0.0
    %1257 = vmatprep.subr.mxu0 0.0
    %1258 = vmatpush1.msra.mxu0 0.0
    %1259 = vmatprep.subr.mxu0 0.0
    %1260 = vmatpush1.msra.mxu0 0.0
    %1261 = vmatprep.subr.mxu0 0.0
    %1262 = vmatpush1.msra.mxu0 0.0
    %1263 = vmatprep.subr.mxu0 0.0
    %1264 = vmatpush1.msra.mxu0 0.0
    %1265 = vmatprep.subr.mxu0 0.0
    %1266 = vmatpush1.msra.mxu0 0.0
    %1267 = vmatprep.subr.mxu0 0.0
    %1268 = vmatpush1.msra.mxu0 0.0
    %1269 = vmatprep.subr.mxu0 0.0
    %1270 = vmatpush1.msra.mxu0 0.0
    %1271 = vmatprep.mubr.f32.mxu0 0.0
    %1272 = vmatmul.mubr.f32.gmra.mrb[0].mxu0 %v1184
    %v1273 = vpop.f32.mrb[0].mxu0
    %v1274 = vadd.f32 %v1206, %v1273
    %v1275 = vpop.f32.mrb[0].mxu0
    %1276 = vmatprep.mubr.f32.mxu0 0.0
    %1277 = vmatmul.mubr.f32.gmra.mrb[0].mxu0 %v1185
    %v1278 = vpop.f32.mrb[0].mxu0
    %v1279 = vadd.f32 %v1206, %v1278
    %v1280 = vpop.f32.mrb[0].mxu0
    %1281 = vdwg.mxu0
    %v1282 = vmax.f32 %v1274, 0.0
    %v1283 = vmax.f32 %v1279, 0.0
    %v1284 = vld [vmem:[#allocation4 + $0x440] sm:$0xff]
    %v1285 = vld [vmem:[#allocation4 + $0x448] sm:$0xff]
    %v1286 = vld [vmem:[#allocation4 + $0x450] sm:$0xff]
    %v1287 = vld [vmem:[#allocation4 + $0x458] sm:$0xff]
    %v1288 = vld [vmem:[#allocation4 + $0x460] sm:$0xff]
    %v1289 = vld [vmem:[#allocation4 + $0x468] sm:$0xff]
    %v1290 = vld [vmem:[#allocation4 + $0x470] sm:$0xff]
    %v1291 = vld [vmem:[#allocation4 + $0x478] sm:$0xff]
    %v1292 = vld [vmem:[#allocation4 + $0x480] sm:$0xff]
    %v1293 = vld [vmem:[#allocation4 + $0x488] sm:$0xff]
    %v1294 = vld [vmem:[#allocation4 + $0x490] sm:$0xff]
    %v1295 = vld [vmem:[#allocation4 + $0x498] sm:$0xff]
    %v1296 = vld [vmem:[#allocation4 + $0x4a0] sm:$0xff]
    %v1297 = vld [vmem:[#allocation4 + $0x4a8] sm:$0xff]
    %v1298 = vld [vmem:[#allocation4 + $0x4b0] sm:$0xff]
    %v1299 = vld [vmem:[#allocation4 + $0x4b8] sm:$0xff]
    %v1300 = vld [vmem:[#allocation4 + $0x4c0] sm:$0x1]
    %v1301 = vlaneseq
    %v1302 = vshrl.u32 %v1301, 7
    %v1303 = vsub.s32 0, %v1302
    %v1304 = vrot.slane %v1300, %v1303
    %1305 = vmatprep.subr.mxu0 0.0
    %1306 = vmatpush1.msra.mxu0 %v1284
    %1307 = vmatprep.subr.mxu0 0.0
    %1308 = vmatpush1.msra.mxu0 %v1285
    %1309 = vmatprep.subr.mxu0 0.0
    %1310 = vmatpush1.msra.mxu0 %v1286
    %1311 = vmatprep.subr.mxu0 0.0
    %1312 = vmatpush1.msra.mxu0 %v1287
    %1313 = vmatprep.subr.mxu0 0.0
    %1314 = vmatpush1.msra.mxu0 %v1288
    %1315 = vmatprep.subr.mxu0 0.0
    %1316 = vmatpush1.msra.mxu0 %v1289
    %1317 = vmatprep.subr.mxu0 0.0
    %1318 = vmatpush1.msra.mxu0 %v1290
    %1319 = vmatprep.subr.mxu0 0.0
    %1320 = vmatpush1.msra.mxu0 %v1291
    %1321 = vmatprep.subr.mxu0 0.0
    %1322 = vmatpush1.msra.mxu0 %v1292
    %1323 = vmatprep.subr.mxu0 0.0
    %1324 = vmatpush1.msra.mxu0 %v1293
    %1325 = vmatprep.subr.mxu0 0.0
    %1326 = vmatpush1.msra.mxu0 %v1294
    %1327 = vmatprep.subr.mxu0 0.0
    %1328 = vmatpush1.msra.mxu0 %v1295
    %1329 = vmatprep.subr.mxu0 0.0
    %1330 = vmatpush1.msra.mxu0 %v1296
    %1331 = vmatprep.subr.mxu0 0.0
    %1332 = vmatpush1.msra.mxu0 %v1297
    %1333 = vmatprep.subr.mxu0 0.0
    %1334 = vmatpush1.msra.mxu0 %v1298
    %1335 = vmatprep.subr.mxu0 0.0
    %1336 = vmatpush1.msra.mxu0 %v1299
    %1337 = vmatprep.subr.mxu0 0.0
    %1338 = vmatpush1.msra.mxu0 0.0
    %1339 = vmatprep.subr.mxu0 0.0
    %1340 = vmatpush1.msra.mxu0 0.0
    %1341 = vmatprep.subr.mxu0 0.0
    %1342 = vmatpush1.msra.mxu0 0.0
    %1343 = vmatprep.subr.mxu0 0.0
    %1344 = vmatpush1.msra.mxu0 0.0
    %1345 = vmatprep.subr.mxu0 0.0
    %1346 = vmatpush1.msra.mxu0 0.0
    %1347 = vmatprep.subr.mxu0 0.0
    %1348 = vmatpush1.msra.mxu0 0.0
    %1349 = vmatprep.subr.mxu0 0.0
    %1350 = vmatpush1.msra.mxu0 0.0
    %1351 = vmatprep.subr.mxu0 0.0
    %1352 = vmatpush1.msra.mxu0 0.0
    %1353 = vmatprep.subr.mxu0 0.0
    %1354 = vmatpush1.msra.mxu0 0.0
    %1355 = vmatprep.subr.mxu0 0.0
    %1356 = vmatpush1.msra.mxu0 0.0
    %1357 = vmatprep.subr.mxu0 0.0
    %1358 = vmatpush1.msra.mxu0 0.0
    %1359 = vmatprep.subr.mxu0 0.0
    %1360 = vmatpush1.msra.mxu0 0.0
    %1361 = vmatprep.subr.mxu0 0.0
    %1362 = vmatpush1.msra.mxu0 0.0
    %1363 = vmatprep.subr.mxu0 0.0
    %1364 = vmatpush1.msra.mxu0 0.0
    %1365 = vmatprep.subr.mxu0 0.0
    %1366 = vmatpush1.msra.mxu0 0.0
    %1367 = vmatprep.subr.mxu0 0.0
    %1368 = vmatpush1.msra.mxu0 0.0
    %1369 = vmatprep.mubr.f32.mxu0 0.0
    %1370 = vmatmul.mubr.f32.gmra.mrb[0].mxu0 %v1282
    %v1371 = vpop.f32.mrb[0].mxu0
    %v1372 = vadd.f32 %v1304, %v1371
    %v1373 = vpop.f32.mrb[0].mxu0
    %1374 = vmatprep.mubr.f32.mxu0 0.0
    %1375 = vmatmul.mubr.f32.gmra.mrb[0].mxu0 %v1283
    %v1376 = vpop.f32.mrb[0].mxu0
    %v1377 = vadd.f32 %v1304, %v1376
    %v1378 = vpop.f32.mrb[0].mxu0
    %1379 = vdwg.mxu0
    %v1380 = vmax.f32 %v1372, 0.0
    %v1381 = vmax.f32 %v1377, 0.0
    %v1382 = vld [vmem:[#allocation4 + $0x4c8] sm:$0xff]
    %v1383 = vld [vmem:[#allocation4 + $0x4d0] sm:$0xff]
    %v1384 = vld [vmem:[#allocation4 + $0x4d8] sm:$0xff]
    %v1385 = vld [vmem:[#allocation4 + $0x4e0] sm:$0xff]
    %v1386 = vld [vmem:[#allocation4 + $0x4e8] sm:$0xff]
    %v1387 = vld [vmem:[#allocation4 + $0x4f0] sm:$0xff]
    %v1388 = vld [vmem:[#allocation4 + $0x4f8] sm:$0xff]
    %v1389 = vld [vmem:[#allocation4 + $0x500] sm:$0xff]
    %v1390 = vld [vmem:[#allocation4 + $0x508] sm:$0xff]
    %v1391 = vld [vmem:[#allocation4 + $0x510] sm:$0xff]
    %v1392 = vld [vmem:[#allocation4 + $0x518] sm:$0xff]
    %v1393 = vld [vmem:[#allocation4 + $0x520] sm:$0xff]
    %v1394 = vld [vmem:[#allocation4 + $0x528] sm:$0xff]
    %v1395 = vld [vmem:[#allocation4 + $0x530] sm:$0xff]
    %v1396 = vld [vmem:[#allocation4 + $0x538] sm:$0xff]
    %v1397 = vld [vmem:[#allocation4 + $0x540] sm:$0xff]
    %v1398 = vld [vmem:[#allocation4 + $0x548] sm:$0x1]
    %v1399 = vlaneseq
    %v1400 = vshrl.u32 %v1399, 7
    %v1401 = vsub.s32 0, %v1400
    %v1402 = vrot.slane %v1398, %v1401
    %1403 = vmatprep.subr.mxu0 0.0
    %1404 = vmatpush1.msra.mxu0 %v1382
    %1405 = vmatprep.subr.mxu0 0.0
    %1406 = vmatpush1.msra.mxu0 %v1383
    %1407 = vmatprep.subr.mxu0 0.0
    %1408 = vmatpush1.msra.mxu0 %v1384
    %1409 = vmatprep.subr.mxu0 0.0
    %1410 = vmatpush1.msra.mxu0 %v1385
    %1411 = vmatprep.subr.mxu0 0.0
    %1412 = vmatpush1.msra.mxu0 %v1386
    %1413 = vmatprep.subr.mxu0 0.0
    %1414 = vmatpush1.msra.mxu0 %v1387
    %1415 = vmatprep.subr.mxu0 0.0
    %1416 = vmatpush1.msra.mxu0 %v1388
    %1417 = vmatprep.subr.mxu0 0.0
    %1418 = vmatpush1.msra.mxu0 %v1389
    %1419 = vmatprep.subr.mxu0 0.0
    %1420 = vmatpush1.msra.mxu0 %v1390
    %1421 = vmatprep.subr.mxu0 0.0
    %1422 = vmatpush1.msra.mxu0 %v1391
    %1423 = vmatprep.subr.mxu0 0.0
    %1424 = vmatpush1.msra.mxu0 %v1392
    %1425 = vmatprep.subr.mxu0 0.0
    %1426 = vmatpush1.msra.mxu0 %v1393
    %1427 = vmatprep.subr.mxu0 0.0
    %1428 = vmatpush1.msra.mxu0 %v1394
    %1429 = vmatprep.subr.mxu0 0.0
    %1430 = vmatpush1.msra.mxu0 %v1395
    %1431 = vmatprep.subr.mxu0 0.0
    %1432 = vmatpush1.msra.mxu0 %v1396
    %1433 = vmatprep.subr.mxu0 0.0
    %1434 = vmatpush1.msra.mxu0 %v1397
    %1435 = vmatprep.subr.mxu0 0.0
    %1436 = vmatpush1.msra.mxu0 0.0
    %1437 = vmatprep.subr.mxu0 0.0
    %1438 = vmatpush1.msra.mxu0 0.0
    %1439 = vmatprep.subr.mxu0 0.0
    %1440 = vmatpush1.msra.mxu0 0.0
    %1441 = vmatprep.subr.mxu0 0.0
    %1442 = vmatpush1.msra.mxu0 0.0
    %1443 = vmatprep.subr.mxu0 0.0
    %1444 = vmatpush1.msra.mxu0 0.0
    %1445 = vmatprep.subr.mxu0 0.0
    %1446 = vmatpush1.msra.mxu0 0.0
    %1447 = vmatprep.subr.mxu0 0.0
    %1448 = vmatpush1.msra.mxu0 0.0
    %1449 = vmatprep.subr.mxu0 0.0
    %1450 = vmatpush1.msra.mxu0 0.0
    %1451 = vmatprep.subr.mxu0 0.0
    %1452 = vmatpush1.msra.mxu0 0.0
    %1453 = vmatprep.subr.mxu0 0.0
    %1454 = vmatpush1.msra.mxu0 0.0
    %1455 = vmatprep.subr.mxu0 0.0
    %1456 = vmatpush1.msra.mxu0 0.0
    %1457 = vmatprep.subr.mxu0 0.0
    %1458 = vmatpush1.msra.mxu0 0.0
    %1459 = vmatprep.subr.mxu0 0.0
    %1460 = vmatpush1.msra.mxu0 0.0
    %1461 = vmatprep.subr.mxu0 0.0
    %1462 = vmatpush1.msra.mxu0 0.0
    %1463 = vmatprep.subr.mxu0 0.0
    %1464 = vmatpush1.msra.mxu0 0.0
    %1465 = vmatprep.subr.mxu0 0.0
    %1466 = vmatpush1.msra.mxu0 0.0
    %1467 = vmatprep.mubr.f32.mxu0 0.0
    %1468 = vmatmul.mubr.f32.gmra.mrb[0].mxu0 %v1380
    %v1469 = vpop.f32.mrb[0].mxu0
    %v1470 = vadd.f32 %v1402, %v1469
    %v1471 = vpop.f32.mrb[0].mxu0
    %1472 = vmatprep.mubr.f32.mxu0 0.0
    %1473 = vmatmul.mubr.f32.gmra.mrb[0].mxu0 %v1381
    %v1474 = vpop.f32.mrb[0].mxu0
    %v1475 = vadd.f32 %v1402, %v1474
    %v1476 = vpop.f32.mrb[0].mxu0
    %1477 = vdwg.mxu0
    %v1478 = vmax.f32 %v1470, 0.0
    %v1479 = vmax.f32 %v1475, 0.0
    %v1480 = vld [vmem:[#allocation4 + $0x550] sm:$0xff]
    %v1481 = vld [vmem:[#allocation4 + $0x558] sm:$0xff]
    %v1482 = vld [vmem:[#allocation4 + $0x560] sm:$0xff]
    %v1483 = vld [vmem:[#allocation4 + $0x568] sm:$0xff]
    %v1484 = vld [vmem:[#allocation4 + $0x570] sm:$0xff]
    %v1485 = vld [vmem:[#allocation4 + $0x578] sm:$0xff]
    %v1486 = vld [vmem:[#allocation4 + $0x580] sm:$0xff]
    %v1487 = vld [vmem:[#allocation4 + $0x588] sm:$0xff]
    %v1488 = vld [vmem:[#allocation4 + $0x590] sm:$0xff]
    %v1489 = vld [vmem:[#allocation4 + $0x598] sm:$0xff]
    %v1490 = vld [vmem:[#allocation4 + $0x5a0] sm:$0xff]
    %v1491 = vld [vmem:[#allocation4 + $0x5a8] sm:$0xff]
    %v1492 = vld [vmem:[#allocation4 + $0x5b0] sm:$0xff]
    %v1493 = vld [vmem:[#allocation4 + $0x5b8] sm:$0xff]
    %v1494 = vld [vmem:[#allocation4 + $0x5c0] sm:$0xff]
    %v1495 = vld [vmem:[#allocation4 + $0x5c8] sm:$0xff]
    %v1496 = vld [vmem:[#allocation4 + $0x5d0] sm:$0x1]
    %v1497 = vlaneseq
    %v1498 = vshrl.u32 %v1497, 7
    %v1499 = vsub.s32 0, %v1498
    %v1500 = vrot.slane %v1496, %v1499
    %1501 = vmatprep.subr.mxu0 0.0
    %1502 = vmatpush1.msra.mxu0 %v1480
    %1503 = vmatprep.subr.mxu0 0.0
    %1504 = vmatpush1.msra.mxu0 %v1481
    %1505 = vmatprep.subr.mxu0 0.0
    %1506 = vmatpush1.msra.mxu0 %v1482
    %1507 = vmatprep.subr.mxu0 0.0
    %1508 = vmatpush1.msra.mxu0 %v1483
    %1509 = vmatprep.subr.mxu0 0.0
    %1510 = vmatpush1.msra.mxu0 %v1484
    %1511 = vmatprep.subr.mxu0 0.0
    %1512 = vmatpush1.msra.mxu0 %v1485
    %1513 = vmatprep.subr.mxu0 0.0
    %1514 = vmatpush1.msra.mxu0 %v1486
    %1515 = vmatprep.subr.mxu0 0.0
    %1516 = vmatpush1.msra.mxu0 %v1487
    %1517 = vmatprep.subr.mxu0 0.0
    %1518 = vmatpush1.msra.mxu0 %v1488
    %1519 = vmatprep.subr.mxu0 0.0
    %1520 = vmatpush1.msra.mxu0 %v1489
    %1521 = vmatprep.subr.mxu0 0.0
    %1522 = vmatpush1.msra.mxu0 %v1490
    %1523 = vmatprep.subr.mxu0 0.0
    %1524 = vmatpush1.msra.mxu0 %v1491
    %1525 = vmatprep.subr.mxu0 0.0
    %1526 = vmatpush1.msra.mxu0 %v1492
    %1527 = vmatprep.subr.mxu0 0.0
    %1528 = vmatpush1.msra.mxu0 %v1493
    %1529 = vmatprep.subr.mxu0 0.0
    %1530 = vmatpush1.msra.mxu0 %v1494
    %1531 = vmatprep.subr.mxu0 0.0
    %1532 = vmatpush1.msra.mxu0 %v1495
    %1533 = vmatprep.subr.mxu0 0.0
    %1534 = vmatpush1.msra.mxu0 0.0
    %1535 = vmatprep.subr.mxu0 0.0
    %1536 = vmatpush1.msra.mxu0 0.0
    %1537 = vmatprep.subr.mxu0 0.0
    %1538 = vmatpush1.msra.mxu0 0.0
    %1539 = vmatprep.subr.mxu0 0.0
    %1540 = vmatpush1.msra.mxu0 0.0
    %1541 = vmatprep.subr.mxu0 0.0
    %1542 = vmatpush1.msra.mxu0 0.0
    %1543 = vmatprep.subr.mxu0 0.0
    %1544 = vmatpush1.msra.mxu0 0.0
    %1545 = vmatprep.subr.mxu0 0.0
    %1546 = vmatpush1.msra.mxu0 0.0
    %1547 = vmatprep.subr.mxu0 0.0
    %1548 = vmatpush1.msra.mxu0 0.0
    %1549 = vmatprep.subr.mxu0 0.0
    %1550 = vmatpush1.msra.mxu0 0.0
    %1551 = vmatprep.subr.mxu0 0.0
    %1552 = vmatpush1.msra.mxu0 0.0
    %1553 = vmatprep.subr.mxu0 0.0
    %1554 = vmatpush1.msra.mxu0 0.0
    %1555 = vmatprep.subr.mxu0 0.0
    %1556 = vmatpush1.msra.mxu0 0.0
    %1557 = vmatprep.subr.mxu0 0.0
    %1558 = vmatpush1.msra.mxu0 0.0
    %1559 = vmatprep.subr.mxu0 0.0
    %1560 = vmatpush1.msra.mxu0 0.0
    %1561 = vmatprep.subr.mxu0 0.0
    %1562 = vmatpush1.msra.mxu0 0.0
    %1563 = vmatprep.subr.mxu0 0.0
    %1564 = vmatpush1.msra.mxu0 0.0
    %1565 = vmatprep.mubr.f32.mxu0 0.0
    %1566 = vmatmul.mubr.f32.gmra.mrb[0].mxu0 %v1478
    %v1567 = vpop.f32.mrb[0].mxu0
    %v1568 = vadd.f32 %v1500, %v1567
    %v1569 = vpop.f32.mrb[0].mxu0
    %1570 = vmatprep.mubr.f32.mxu0 0.0
    %1571 = vmatmul.mubr.f32.gmra.mrb[0].mxu0 %v1479
    %v1572 = vpop.f32.mrb[0].mxu0
    %v1573 = vadd.f32 %v1500, %v1572
    %v1574 = vpop.f32.mrb[0].mxu0
    %1575 = vdwg.mxu0
    %vm1576 = vcmask 31744
    %v1577 = vsel %vm1576, %v1568, -inf
    %1578 = vmax.xlane.f32.xlu0 %v1577
    %v1579 = vpop.xlane.xlu0 %1578
    %v1580 = vsel %vm1576, %v1573, -inf
    %1581 = vmax.xlane.f32.xlu0 %v1580
    %v1582 = vpop.xlane.xlu0 %1581
    %v1583 = vsub.f32 %v1568, %v1579
    %v1584 = vsub.f32 %v1573, %v1582
    %v1585 = vmul.f32 %v1583, 1.442695
    %v1586 = vpow.pop %v1585
    %v1587 = vmul.f32 %v1584, 1.442695
    %v1588 = vpow.pop %v1587
    %v1589 = vsel %vm1576, %v1586, 0.0
    %1590 = vadd.xlane.f32.xlu0 %v1589
    %v1591 = vpop.xlane.xlu0 %1590
    %v1592 = vsel %vm1576, %v1588, 0.0
    %1593 = vadd.xlane.f32.xlu0 %v1592
    %v1594 = vpop.xlane.xlu0 %1593
    %v1595 = vrcp.pop %v1591
    %v1596 = vrcp.pop %v1594
    %v1597 = vmul.f32 %v1586, %v1595
    %v1598 = vmul.f32 %v1588, %v1596
    %1599 = vst.msk [vmem:[%s2] sm:$0xff] %vm1576, %v1597
    %1600 = vst.msk [vmem:[%s2 + $0x8] sm:$0xff] %vm1576, %v1598
    // Predicated region
    $region18: #{tpu_custom_call.1} parent=1 // pred_check
      _
    $region19: #{tpu_custom_call.1} parent=1 // pred_check_branch
      %1602 = sbr.rel (0) target = $region21
    $region20: #{tpu_custom_call.1} parent=1 // pred_region
      _
    $region21: #{tpu_custom_call.1} parent=1 // pred_fallthru
      _
    // Predicated region
    $region22: #{tpu_custom_call.1} parent=1 // pred_check
      _
    $region23: #{tpu_custom_call.1} parent=1 // pred_check_branch
      %1604 = sbr.rel (0) target = $region25
    $region24: #{tpu_custom_call.1} parent=1 // pred_region
      _
    $region25: #{tpu_custom_call.1} parent=1 // pred_fallthru
      _
    %1605 = vsyncpa [#allocation3], 1
    %1606 = vsyncpa [#allocation5], 1

</llo_original>
